<compile_context>
chip_gen: v6e
topology: v6e:2x2x1
jax: 0.10.0
libtpu: 0.0.40
codegen_flags: <defaults>
</compile_context>

<pallas_src>
import functools

import jax
import jax.numpy as jnp
from jax.experimental import pallas as pl
from jax.experimental.pallas import tpu as pltpu

# ---------------- model config (small, synthetic) ----------------
VOCAB = 128
MAX_POS = 16
TYPE_VOCAB = 2
HIDDEN = 32
NUM_HEADS = 2
HEAD_DIM = HIDDEN // NUM_HEADS
INTERMEDIATE = 64
NUM_LAYERS = 2
NUM_LABELS = 5
LANE = 128               # lane-dense pad width for blobs and outputs
LN_EPS = 1e-12

# ---- bf16 weight-blob row offsets (all multiples of 32 -> sublane aligned) ----
OFF_WQKV = 0
OFF_WO = OFF_WQKV + NUM_LAYERS * HIDDEN
OFF_W1 = OFF_WO + NUM_LAYERS * HIDDEN
OFF_W2 = OFF_W1 + NUM_LAYERS * HIDDEN
OFF_POOL = OFF_W2 + NUM_LAYERS * INTERMEDIATE
OFF_OUT = OFF_POOL + HIDDEN
W_ROWS = OFF_OUT + HIDDEN            # 384 rows x 128 lanes bf16 = 96 KB

# ---- f32 vector-blob rows (LayerNorm scale/shift + biases, lane-padded) ----
V_EMB_LN_G = 0
V_EMB_LN_B = 1
V_LAYER0 = 2
VECS_PER_LAYER = 8                   # bqkv, bo, ln1_g, ln1_b, b1, b2, ln2_g, ln2_b
V_POOL_B = V_LAYER0 + NUM_LAYERS * VECS_PER_LAYER
V_OUT_B = V_POOL_B + 1
V_ROWS = V_OUT_B + 1                 # 20 rows x 128 lanes f32 = 10 KB


# ---------------- fused Pallas kernel ----------------
def _bert_fused_kernel(emb_ref, mask_ref, w_ref, v_ref, logits_ref, pooled_ref,
                       *, batch, seq):
    f32 = jnp.float32
    bf16 = jnp.bfloat16
    rows = batch * seq

    def layernorm(x, g, b):
        mu = jnp.mean(x, axis=-1, keepdims=True)
        var = jnp.mean(jnp.square(x - mu), axis=-1, keepdims=True)
        return (x - mu) * jax.lax.rsqrt(var + f32(LN_EPS)) * g + b

    def gelu(y):
        # TODO(synk): HF BERT default hidden_act is exact erf GELU; tanh approx used.
        c = f32(0.7978845608028654)
        return 0.5 * y * (1.0 + jnp.tanh(c * (y + 0.044715 * y * y * y)))

    # ---- embedding layernorm ----
    h = layernorm(emb_ref[...],
                  v_ref[V_EMB_LN_G:V_EMB_LN_G + 1, :HIDDEN],
                  v_ref[V_EMB_LN_B:V_EMB_LN_B + 1, :HIDDEN])          # [rows, H] f32

    # ---- additive key mask built in-kernel from the raw [B, S] mask ----
    bias = ((1.0 - mask_ref[...]) * f32(-1e9)).reshape(batch, 1, seq)  # [B, 1, S]
    bias_bh = jnp.concatenate([bias] * NUM_HEADS, axis=0)              # [NH*B, 1, S]
    scale = f32(1.0 / (HEAD_DIM ** 0.5))

    def split_heads(x):   # [rows, H] -> [NH*B, S, Dh], head-major batch stack
        return jnp.concatenate(
            [x[:, hh * HEAD_DIM:(hh + 1) * HEAD_DIM].reshape(batch, seq, HEAD_DIM)
             for hh in range(NUM_HEADS)], axis=0)

    # ---- encoder layers; everything stays VMEM/vreg resident ----
    for l in range(NUM_LAYERS):
        r_qkv = OFF_WQKV + l * HIDDEN
        r_wo = OFF_WO + l * HIDDEN
        r_w1 = OFF_W1 + l * HIDDEN
        r_w2 = OFF_W2 + l * INTERMEDIATE
        vb = V_LAYER0 + l * VECS_PER_LAYER

        h_bf = h.astype(bf16)                                   # cast once per layer
        # fused Q|K|V projection: single [rows,32]x[32,96] MXU issue
        qkv = jnp.dot(h_bf, w_ref[r_qkv:r_qkv + HIDDEN, :3 * HIDDEN],
                      preferred_element_type=f32) + v_ref[vb:vb + 1, :3 * HIDDEN]
        q = split_heads(qkv[:, 0:HIDDEN])
        k = split_heads(qkv[:, HIDDEN:2 * HIDDEN])
        v = split_heads(qkv[:, 2 * HIDDEN:3 * HIDDEN])

        # heads folded into the einsum batch dim -> one softmax reduction chain
        s = jnp.einsum("bqd,bkd->bqk", q, k,
                       preferred_element_type=f32) * scale + bias_bh
        s = s - jnp.max(s, axis=-1, keepdims=True)
        p = jnp.exp(s)
        p = p * pl.reciprocal(jnp.sum(p, axis=-1, keepdims=True), approx=True)
        ctx = jnp.einsum("bqk,bkd->bqd", p, v,
                         preferred_element_type=f32)            # [NH*B, S, Dh]

        # merge heads along lanes, single output-projection matmul
        ctx2 = jnp.concatenate(
            [ctx[hh * batch:(hh + 1) * batch].reshape(rows, HEAD_DIM)
             for hh in range(NUM_HEADS)], axis=-1)              # [rows, H]
        attn = jnp.dot(ctx2.astype(bf16), w_ref[r_wo:r_wo + HIDDEN, :HIDDEN],
                       preferred_element_type=f32) + v_ref[vb + 1:vb + 2, :HIDDEN]

        h1 = layernorm(attn + h,
                       v_ref[vb + 2:vb + 3, :HIDDEN], v_ref[vb + 3:vb + 4, :HIDDEN])
        ffn = gelu(jnp.dot(h1.astype(bf16), w_ref[r_w1:r_w1 + HIDDEN, :INTERMEDIATE],
                           preferred_element_type=f32)
                   + v_ref[vb + 4:vb + 5, :INTERMEDIATE])
        ffn = jnp.dot(ffn.astype(bf16), w_ref[r_w2:r_w2 + INTERMEDIATE, :HIDDEN],
                      preferred_element_type=f32) + v_ref[vb + 5:vb + 6, :HIDDEN]
        h = layernorm(ffn + h1,
                      v_ref[vb + 6:vb + 7, :HIDDEN], v_ref[vb + 7:vb + 8, :HIDDEN])

    # ---- CLS rows via static slice (no selection-matrix matmul) ----
    cls = h.reshape(batch, seq, HIDDEN)[:, 0:1, :].reshape(batch, HIDDEN)

    # pooler: 128-lane padded weight -> lane-dense pooled store (pad lanes tanh(0)=0)
    pooled_pad = jnp.tanh(
        jnp.dot(cls.astype(bf16), w_ref[OFF_POOL:OFF_POOL + HIDDEN, :],
                preferred_element_type=f32) + v_ref[V_POOL_B:V_POOL_B + 1, :])
    pooled_ref[...] = pooled_pad.astype(pooled_ref.dtype)

    # classifier (dropout identity at inference); lane-dense padded logits
    logits_ref[...] = (
        jnp.dot(pooled_pad[:, :HIDDEN].astype(bf16), w_ref[OFF_OUT:OFF_OUT + HIDDEN, :],
                preferred_element_type=f32) + v_ref[V_OUT_B:V_OUT_B + 1, :]
    ).astype(logits_ref.dtype)


# ---------------- deterministic parameter init ----------------
def init_params(key):
    def nrm(k, shape, scale=0.02):
        return scale * jax.random.normal(k, shape, dtype=jnp.float32)

    keys = iter(jax.random.split(key, 256))
    p = {
        "word_emb": nrm(next(keys), (VOCAB, HIDDEN)),
        "pos_emb": nrm(next(keys), (MAX_POS, HIDDEN)),
        "type_emb": nrm(next(keys), (TYPE_VOCAB, HIDDEN)),
        "emb_ln_g": jnp.ones((HIDDEN,), jnp.float32),
        "emb_ln_b": jnp.zeros((HIDDEN,), jnp.float32),
        "pooler_w": nrm(next(keys), (HIDDEN, HIDDEN)),
        "pooler_b": jnp.zeros((HIDDEN,), jnp.float32),
        "out_w": nrm(next(keys), (HIDDEN, NUM_LABELS)),
        "out_b": jnp.zeros((NUM_LABELS,), jnp.float32),
        "layers": [],
    }
    for _ in range(NUM_LAYERS):
        p["layers"].append({
            "wq": nrm(next(keys), (HIDDEN, HIDDEN)), "bq": jnp.zeros((HIDDEN,), jnp.float32),
            "wk": nrm(next(keys), (HIDDEN, HIDDEN)), "bk": jnp.zeros((HIDDEN,), jnp.float32),
            "wv": nrm(next(keys), (HIDDEN, HIDDEN)), "bv": jnp.zeros((HIDDEN,), jnp.float32),
            "wo": nrm(next(keys), (HIDDEN, HIDDEN)), "bo": jnp.zeros((HIDDEN,), jnp.float32),
            "ln1_g": jnp.ones((HIDDEN,), jnp.float32), "ln1_b": jnp.zeros((HIDDEN,), jnp.float32),
            "w1": nrm(next(keys), (HIDDEN, INTERMEDIATE)), "b1": jnp.zeros((INTERMEDIATE,), jnp.float32),
            "w2": nrm(next(keys), (INTERMEDIATE, HIDDEN)), "b2": jnp.zeros((HIDDEN,), jnp.float32),
            "ln2_g": jnp.ones((HIDDEN,), jnp.float32), "ln2_b": jnp.zeros((HIDDEN,), jnp.float32),
        })
    return p


def make_packed_params(p):
    """One-time repack (hoisted out of forward): all matmul weights -> one bf16
    [W_ROWS,128] blob; all LN/bias vectors -> one f32 [V_ROWS,128] lane-padded blob."""
    w = jnp.zeros((W_ROWS, LANE), jnp.float32)
    v = jnp.zeros((V_ROWS, LANE), jnp.float32)

    for l, lp in enumerate(p["layers"]):
        wqkv = jnp.concatenate([lp["wq"], lp["wk"], lp["wv"]], axis=1)   # [H, 3H]
        w = w.at[OFF_WQKV + l * HIDDEN:OFF_WQKV + (l + 1) * HIDDEN, :3 * HIDDEN].set(wqkv)
        w = w.at[OFF_WO + l * HIDDEN:OFF_WO + (l + 1) * HIDDEN, :HIDDEN].set(lp["wo"])
        w = w.at[OFF_W1 + l * HIDDEN:OFF_W1 + (l + 1) * HIDDEN, :INTERMEDIATE].set(lp["w1"])
        w = w.at[OFF_W2 + l * INTERMEDIATE:OFF_W2 + (l + 1) * INTERMEDIATE, :HIDDEN].set(lp["w2"])

        vb = V_LAYER0 + l * VECS_PER_LAYER
        bqkv = jnp.concatenate([lp["bq"], lp["bk"], lp["bv"]])           # [3H]
        v = v.at[vb + 0, :3 * HIDDEN].set(bqkv)
        v = v.at[vb + 1, :HIDDEN].set(lp["bo"])
        v = v.at[vb + 2, :HIDDEN].set(lp["ln1_g"])
        v = v.at[vb + 3, :HIDDEN].set(lp["ln1_b"])
        v = v.at[vb + 4, :INTERMEDIATE].set(lp["b1"])
        v = v.at[vb + 5, :HIDDEN].set(lp["b2"])
        v = v.at[vb + 6, :HIDDEN].set(lp["ln2_g"])
        v = v.at[vb + 7, :HIDDEN].set(lp["ln2_b"])

    w = w.at[OFF_POOL:OFF_POOL + HIDDEN, :HIDDEN].set(p["pooler_w"])
    w = w.at[OFF_OUT:OFF_OUT + HIDDEN, :NUM_LABELS].set(p["out_w"])
    v = v.at[V_EMB_LN_G, :HIDDEN].set(p["emb_ln_g"])
    v = v.at[V_EMB_LN_B, :HIDDEN].set(p["emb_ln_b"])
    v = v.at[V_POOL_B, :HIDDEN].set(p["pooler_b"])
    v = v.at[V_OUT_B, :NUM_LABELS].set(p["out_b"])

    return {
        "w_blob": w.astype(jnp.bfloat16),
        "v_blob": v,
        "word_emb": p["word_emb"],
        "pos_emb": p["pos_emb"],
        "type_emb": p["type_emb"],
    }


# ---------------- forward pass ----------------
def forward(packed, input_ids, attention_mask):
    B, S = input_ids.shape
    # embeddings (tiny gather is XLA glue); token_type_ids hard-coded to 0 (HF default)
    emb = (packed["word_emb"][input_ids]
           + packed["pos_emb"][:S][None, :, :]
           + packed["type_emb"][0][None, None, :]).reshape(B * S, HIDDEN)
    mask = attention_mask.astype(jnp.float32)          # [B, S]; bias built in-kernel

    vmem = pl.BlockSpec(memory_space=pltpu.MemorySpace.VMEM)
    logits_pad, pooled_pad = pl.pallas_call(
        functools.partial(_bert_fused_kernel, batch=B, seq=S),
        out_shape=(jax.ShapeDtypeStruct((B, LANE), jnp.float32),   # lane-dense logits
                   jax.ShapeDtypeStruct((B, LANE), jnp.float32)),  # lane-dense pooled
        in_specs=[vmem, vmem, vmem, vmem],
        out_specs=(vmem, vmem),
    )(emb, mask, packed["w_blob"], packed["v_blob"])

    logits = logits_pad[:, :NUM_LABELS]
    pooled = pooled_pad[:, :HIDDEN]
    return logits, pooled                               # matches (logits, pooled_output)


if __name__ == "__main__":
    key = jax.random.PRNGKey(0)
    k_ids, k_param = jax.random.split(key)
    B, S = 2, 8
    input_ids = jax.random.randint(k_ids, (B, S), 0, VOCAB, dtype=jnp.int32)
    attention_mask = jnp.ones((B, S), dtype=jnp.int32).at[1, 6:].set(0)

    params = init_params(k_param)
    packed = make_packed_params(params)     # one-time weight repack (not per call)

    fwd = jax.jit(forward)
    logits, pooled = fwd(packed, input_ids, attention_mask)
    jax.block_until_ready((logits, pooled))
    assert logits.shape == (B, NUM_LABELS) and pooled.shape == (B, HIDDEN)
    assert bool(jnp.all(jnp.isfinite(logits))) and bool(jnp.all(jnp.isfinite(pooled)))
    print("KERNEL_OK")
</pallas_src>

<mosaic_0001>
module attributes {stable_mosaic.version = 11 : i64} {
  func.func @_bert_fused_kernel(%arg0: memref<16x32xf32, #tpu.memory_space<vmem>>, %arg1: memref<2x8xf32, #tpu.memory_space<vmem>>, %arg2: memref<384x128xbf16, #tpu.memory_space<vmem>>, %arg3: memref<20x128xf32, #tpu.memory_space<vmem>>, %arg4: memref<2x128xf32, #tpu.memory_space<vmem>>, %arg5: memref<2x128xf32, #tpu.memory_space<vmem>>) attributes {dimension_semantics = [], scalar_prefetch = 0 : i64, scratch_operands = 0 : i64, tpu.core_type = #tpu.core_type<tc>} {
    %c0 = arith.constant 0 : index
    %c0_0 = arith.constant 0 : index
    %0 = vector.load %arg0[%c0, %c0_0] : memref<16x32xf32, #tpu.memory_space<vmem>>, vector<16x32xf32>
    %c0_1 = arith.constant 0 : index
    %c0_2 = arith.constant 0 : index
    %1 = vector.load %arg3[%c0_1, %c0_2] : memref<20x128xf32, #tpu.memory_space<vmem>>, vector<1x32xf32>
    %c1 = arith.constant 1 : index
    %c0_3 = arith.constant 0 : index
    %2 = vector.load %arg3[%c1, %c0_3] : memref<20x128xf32, #tpu.memory_space<vmem>>, vector<1x32xf32>
    %cst = arith.constant dense<0.000000e+00> : vector<16xf32>
    %3 = vector.multi_reduction <add>, %0, %cst [1] : vector<16x32xf32> to vector<16xf32>
    %4 = vector.shape_cast %3 : vector<16xf32> to vector<16x1xf32>
    %cst_4 = arith.constant 3.200000e+01 : f32
    %5 = vector.broadcast %cst_4 : f32 to vector<16x1xf32>
    %6 = arith.divf %4, %5 : vector<16x1xf32>
    %7 = vector.broadcast %6 : vector<16x1xf32> to vector<16x32xf32>
    %8 = arith.subf %0, %7 : vector<16x32xf32>
    %9 = arith.mulf %8, %8 : vector<16x32xf32>
    %cst_5 = arith.constant dense<0.000000e+00> : vector<16xf32>
    %10 = vector.multi_reduction <add>, %9, %cst_5 [1] : vector<16x32xf32> to vector<16xf32>
    %11 = vector.shape_cast %10 : vector<16xf32> to vector<16x1xf32>
    %cst_6 = arith.constant 3.200000e+01 : f32
    %12 = vector.broadcast %cst_6 : f32 to vector<16x1xf32>
    %13 = arith.divf %11, %12 : vector<16x1xf32>
    %14 = vector.broadcast %6 : vector<16x1xf32> to vector<16x32xf32>
    %15 = arith.subf %0, %14 : vector<16x32xf32>
    %cst_7 = arith.constant 9.99999996E-13 : f32
    %16 = vector.broadcast %cst_7 : f32 to vector<16x1xf32>
    %17 = arith.addf %13, %16 : vector<16x1xf32>
    %18 = math.rsqrt %17 : vector<16x1xf32>
    %19 = vector.broadcast %18 : vector<16x1xf32> to vector<16x32xf32>
    %20 = arith.mulf %15, %19 : vector<16x32xf32>
    %21 = vector.broadcast %1 : vector<1x32xf32> to vector<16x32xf32>
    %22 = arith.mulf %20, %21 : vector<16x32xf32>
    %23 = vector.broadcast %2 : vector<1x32xf32> to vector<16x32xf32>
    %24 = arith.addf %22, %23 : vector<16x32xf32>
    %c0_8 = arith.constant 0 : index
    %c0_9 = arith.constant 0 : index
    %25 = vector.load %arg1[%c0_8, %c0_9] : memref<2x8xf32, #tpu.memory_space<vmem>>, vector<2x8xf32>
    %cst_10 = arith.constant 1.000000e+00 : f32
    %26 = vector.broadcast %cst_10 : f32 to vector<2x8xf32>
    %27 = arith.subf %26, %25 : vector<2x8xf32>
    %cst_11 = arith.constant -1.000000e+09 : f32
    %28 = vector.broadcast %cst_11 : f32 to vector<2x8xf32>
    %29 = arith.mulf %27, %28 : vector<2x8xf32>
    %30 = vector.shape_cast %29 : vector<2x8xf32> to vector<2x1x8xf32>
    %31 = tpu.concatenate %30, %30 in 0 : vector<2x1x8xf32>, vector<2x1x8xf32> -> vector<4x1x8xf32>
    %32 = arith.truncf %24 : vector<16x32xf32> to vector<16x32xbf16>
    %c0_12 = arith.constant 0 : index
    %c0_13 = arith.constant 0 : index
    %33 = vector.load %arg2[%c0_12, %c0_13] : memref<384x128xbf16, #tpu.memory_space<vmem>>, vector<32x96xbf16>
    %cst_14 = arith.constant dense<0.000000e+00> : vector<16x96xf32>
    %34 = tpu.matmul %32, %33, %cst_14 {dimension_numbers = #tpu.dot_dimension_numbers<[1], [0], [0], [1], [0, 0, 1, 1], [], []>} : vector<16x32xbf16>, vector<32x96xbf16>, vector<16x96xf32> -> vector<16x96xf32>
    %c2 = arith.constant 2 : index
    %c0_15 = arith.constant 0 : index
    %35 = vector.load %arg3[%c2, %c0_15] : memref<20x128xf32, #tpu.memory_space<vmem>>, vector<1x96xf32>
    %36 = vector.broadcast %35 : vector<1x96xf32> to vector<16x96xf32>
    %37 = arith.addf %34, %36 : vector<16x96xf32>
    %38 = vector.extract_strided_slice %37 {offsets = [0, 0], sizes = [16, 32], strides = [1, 1]} : vector<16x96xf32> to vector<16x32xf32>
    %39 = vector.extract_strided_slice %38 {offsets = [0, 0], sizes = [16, 16], strides = [1, 1]} : vector<16x32xf32> to vector<16x16xf32>
    %40 = vector.shape_cast %39 : vector<16x16xf32> to vector<2x8x16xf32>
    %41 = vector.extract_strided_slice %38 {offsets = [0, 16], sizes = [16, 16], strides = [1, 1]} : vector<16x32xf32> to vector<16x16xf32>
    %42 = vector.shape_cast %41 : vector<16x16xf32> to vector<2x8x16xf32>
    %43 = tpu.concatenate %40, %42 in 0 : vector<2x8x16xf32>, vector<2x8x16xf32> -> vector<4x8x16xf32>
    %44 = vector.extract_strided_slice %37 {offsets = [0, 32], sizes = [16, 32], strides = [1, 1]} : vector<16x96xf32> to vector<16x32xf32>
    %45 = vector.extract_strided_slice %44 {offsets = [0, 0], sizes = [16, 16], strides = [1, 1]} : vector<16x32xf32> to vector<16x16xf32>
    %46 = vector.shape_cast %45 : vector<16x16xf32> to vector<2x8x16xf32>
    %47 = vector.extract_strided_slice %44 {offsets = [0, 16], sizes = [16, 16], strides = [1, 1]} : vector<16x32xf32> to vector<16x16xf32>
    %48 = vector.shape_cast %47 : vector<16x16xf32> to vector<2x8x16xf32>
    %49 = tpu.concatenate %46, %48 in 0 : vector<2x8x16xf32>, vector<2x8x16xf32> -> vector<4x8x16xf32>
    %50 = vector.extract_strided_slice %37 {offsets = [0, 64], sizes = [16, 32], strides = [1, 1]} : vector<16x96xf32> to vector<16x32xf32>
    %51 = vector.extract_strided_slice %50 {offsets = [0, 0], sizes = [16, 16], strides = [1, 1]} : vector<16x32xf32> to vector<16x16xf32>
    %52 = vector.shape_cast %51 : vector<16x16xf32> to vector<2x8x16xf32>
    %53 = vector.extract_strided_slice %50 {offsets = [0, 16], sizes = [16, 16], strides = [1, 1]} : vector<16x32xf32> to vector<16x16xf32>
    %54 = vector.shape_cast %53 : vector<16x16xf32> to vector<2x8x16xf32>
    %55 = tpu.concatenate %52, %54 in 0 : vector<2x8x16xf32>, vector<2x8x16xf32> -> vector<4x8x16xf32>
    "tpu.trace_start"() <{level = 10 : i32, message = "bqd,bkd->bqk"}> : () -> ()
    %cst_16 = arith.constant dense<0.000000e+00> : vector<4x8x8xf32>
    %56 = tpu.matmul %43, %49, %cst_16 {dimension_numbers = #tpu.dot_dimension_numbers<[2], [2], [1], [1], [0, 0, 0, 1, 1, 1], [0], [0]>} : vector<4x8x16xf32>, vector<4x8x16xf32>, vector<4x8x8xf32> -> vector<4x8x8xf32>
    "tpu.trace_stop"() : () -> ()
    %cst_17 = arith.constant 2.500000e-01 : f32
    %57 = vector.broadcast %cst_17 : f32 to vector<4x8x8xf32>
    %58 = arith.mulf %56, %57 : vector<4x8x8xf32>
    %59 = vector.broadcast %31 : vector<4x1x8xf32> to vector<4x8x8xf32>
    %60 = arith.addf %58, %59 : vector<4x8x8xf32>
    %cst_18 = arith.constant dense<0xFF800000> : vector<4x8xf32>
    %61 = vector.multi_reduction <maximumf>, %60, %cst_18 [2] : vector<4x8x8xf32> to vector<4x8xf32>
    %62 = vector.shape_cast %61 : vector<4x8xf32> to vector<4x8x1xf32>
    %63 = vector.broadcast %62 : vector<4x8x1xf32> to vector<4x8x8xf32>
    %64 = arith.subf %60, %63 : vector<4x8x8xf32>
    %65 = math.exp %64 : vector<4x8x8xf32>
    %cst_19 = arith.constant dense<0.000000e+00> : vector<4x8xf32>
    %66 = vector.multi_reduction <add>, %65, %cst_19 [2] : vector<4x8x8xf32> to vector<4x8xf32>
    %67 = vector.shape_cast %66 : vector<4x8xf32> to vector<4x8x1xf32>
    %68 = tpu.reciprocal %67 {approx = true} : vector<4x8x1xf32> -> vector<4x8x1xf32>
    %69 = vector.broadcast %68 : vector<4x8x1xf32> to vector<4x8x8xf32>
    %70 = arith.mulf %65, %69 : vector<4x8x8xf32>
    "tpu.trace_start"() <{level = 10 : i32, message = "bqk,bkd->bqd"}> : () -> ()
    %cst_20 = arith.constant dense<0.000000e+00> : vector<4x8x16xf32>
    %71 = tpu.matmul %70, %55, %cst_20 {dimension_numbers = #tpu.dot_dimension_numbers<[2], [1], [1], [2], [0, 0, 0, 1, 1, 2], [0], [0]>} : vector<4x8x8xf32>, vector<4x8x16xf32>, vector<4x8x16xf32> -> vector<4x8x16xf32>
    "tpu.trace_stop"() : () -> ()
    %72 = vector.extract_strided_slice %71 {offsets = [0, 0, 0], sizes = [2, 8, 16], strides = [1, 1, 1]} : vector<4x8x16xf32> to vector<2x8x16xf32>
    %73 = vector.shape_cast %72 : vector<2x8x16xf32> to vector<16x16xf32>
    %74 = vector.extract_strided_slice %71 {offsets = [2, 0, 0], sizes = [2, 8, 16], strides = [1, 1, 1]} : vector<4x8x16xf32> to vector<2x8x16xf32>
    %75 = vector.shape_cast %74 : vector<2x8x16xf32> to vector<16x16xf32>
    %76 = tpu.concatenate %73, %75 in 1 : vector<16x16xf32>, vector<16x16xf32> -> vector<16x32xf32>
    %77 = arith.truncf %76 : vector<16x32xf32> to vector<16x32xbf16>
    %c64 = arith.constant 64 : index
    %c0_21 = arith.constant 0 : index
    %78 = vector.load %arg2[%c64, %c0_21] : memref<384x128xbf16, #tpu.memory_space<vmem>>, vector<32x32xbf16>
    %cst_22 = arith.constant dense<0.000000e+00> : vector<16x32xf32>
    %79 = tpu.matmul %77, %78, %cst_22 {dimension_numbers = #tpu.dot_dimension_numbers<[1], [0], [0], [1], [0, 0, 1, 1], [], []>} : vector<16x32xbf16>, vector<32x32xbf16>, vector<16x32xf32> -> vector<16x32xf32>
    %c3 = arith.constant 3 : index
    %c0_23 = arith.constant 0 : index
    %80 = vector.load %arg3[%c3, %c0_23] : memref<20x128xf32, #tpu.memory_space<vmem>>, vector<1x32xf32>
    %81 = vector.broadcast %80 : vector<1x32xf32> to vector<16x32xf32>
    %82 = arith.addf %79, %81 : vector<16x32xf32>
    %83 = arith.addf %82, %24 : vector<16x32xf32>
    %c4 = arith.constant 4 : index
    %c0_24 = arith.constant 0 : index
    %84 = vector.load %arg3[%c4, %c0_24] : memref<20x128xf32, #tpu.memory_space<vmem>>, vector<1x32xf32>
    %c5 = arith.constant 5 : index
    %c0_25 = arith.constant 0 : index
    %85 = vector.load %arg3[%c5, %c0_25] : memref<20x128xf32, #tpu.memory_space<vmem>>, vector<1x32xf32>
    %cst_26 = arith.constant dense<0.000000e+00> : vector<16xf32>
    %86 = vector.multi_reduction <add>, %83, %cst_26 [1] : vector<16x32xf32> to vector<16xf32>
    %87 = vector.shape_cast %86 : vector<16xf32> to vector<16x1xf32>
    %cst_27 = arith.constant 3.200000e+01 : f32
    %88 = vector.broadcast %cst_27 : f32 to vector<16x1xf32>
    %89 = arith.divf %87, %88 : vector<16x1xf32>
    %90 = vector.broadcast %89 : vector<16x1xf32> to vector<16x32xf32>
    %91 = arith.subf %83, %90 : vector<16x32xf32>
    %92 = arith.mulf %91, %91 : vector<16x32xf32>
    %cst_28 = arith.constant dense<0.000000e+00> : vector<16xf32>
    %93 = vector.multi_reduction <add>, %92, %cst_28 [1] : vector<16x32xf32> to vector<16xf32>
    %94 = vector.shape_cast %93 : vector<16xf32> to vector<16x1xf32>
    %cst_29 = arith.constant 3.200000e+01 : f32
    %95 = vector.broadcast %cst_29 : f32 to vector<16x1xf32>
    %96 = arith.divf %94, %95 : vector<16x1xf32>
    %97 = vector.broadcast %89 : vector<16x1xf32> to vector<16x32xf32>
    %98 = arith.subf %83, %97 : vector<16x32xf32>
    %cst_30 = arith.constant 9.99999996E-13 : f32
    %99 = vector.broadcast %cst_30 : f32 to vector<16x1xf32>
    %100 = arith.addf %96, %99 : vector<16x1xf32>
    %101 = math.rsqrt %100 : vector<16x1xf32>
    %102 = vector.broadcast %101 : vector<16x1xf32> to vector<16x32xf32>
    %103 = arith.mulf %98, %102 : vector<16x32xf32>
    %104 = vector.broadcast %84 : vector<1x32xf32> to vector<16x32xf32>
    %105 = arith.mulf %103, %104 : vector<16x32xf32>
    %106 = vector.broadcast %85 : vector<1x32xf32> to vector<16x32xf32>
    %107 = arith.addf %105, %106 : vector<16x32xf32>
    %108 = arith.truncf %107 : vector<16x32xf32> to vector<16x32xbf16>
    %c128 = arith.constant 128 : index
    %c0_31 = arith.constant 0 : index
    %109 = vector.load %arg2[%c128, %c0_31] : memref<384x128xbf16, #tpu.memory_space<vmem>>, vector<32x64xbf16>
    %cst_32 = arith.constant dense<0.000000e+00> : vector<16x64xf32>
    %110 = tpu.matmul %108, %109, %cst_32 {dimension_numbers = #tpu.dot_dimension_numbers<[1], [0], [0], [1], [0, 0, 1, 1], [], []>} : vector<16x32xbf16>, vector<32x64xbf16>, vector<16x64xf32> -> vector<16x64xf32>
    %c6 = arith.constant 6 : index
    %c0_33 = arith.constant 0 : index
    %111 = vector.load %arg3[%c6, %c0_33] : memref<20x128xf32, #tpu.memory_space<vmem>>, vector<1x64xf32>
    %112 = vector.broadcast %111 : vector<1x64xf32> to vector<16x64xf32>
    %113 = arith.addf %110, %112 : vector<16x64xf32>
    %cst_34 = arith.constant 5.000000e-01 : f32
    %114 = vector.broadcast %cst_34 : f32 to vector<16x64xf32>
    %115 = arith.mulf %114, %113 : vector<16x64xf32>
    %cst_35 = arith.constant 4.471500e-02 : f32
    %116 = vector.broadcast %cst_35 : f32 to vector<16x64xf32>
    %117 = arith.mulf %116, %113 : vector<16x64xf32>
    %118 = arith.mulf %117, %113 : vector<16x64xf32>
    %119 = arith.mulf %118, %113 : vector<16x64xf32>
    %120 = arith.addf %113, %119 : vector<16x64xf32>
    %cst_36 = arith.constant 0.797884583 : f32
    %121 = vector.broadcast %cst_36 : f32 to vector<16x64xf32>
    %122 = arith.mulf %121, %120 : vector<16x64xf32>
    %123 = math.tanh %122 : vector<16x64xf32>
    %cst_37 = arith.constant 1.000000e+00 : f32
    %124 = vector.broadcast %cst_37 : f32 to vector<16x64xf32>
    %125 = arith.addf %124, %123 : vector<16x64xf32>
    %126 = arith.mulf %115, %125 : vector<16x64xf32>
    %127 = arith.truncf %126 : vector<16x64xf32> to vector<16x64xbf16>
    %c192 = arith.constant 192 : index
    %c0_38 = arith.constant 0 : index
    %128 = vector.load %arg2[%c192, %c0_38] : memref<384x128xbf16, #tpu.memory_space<vmem>>, vector<64x32xbf16>
    %cst_39 = arith.constant dense<0.000000e+00> : vector<16x32xf32>
    %129 = tpu.matmul %127, %128, %cst_39 {dimension_numbers = #tpu.dot_dimension_numbers<[1], [0], [0], [1], [0, 0, 1, 1], [], []>} : vector<16x64xbf16>, vector<64x32xbf16>, vector<16x32xf32> -> vector<16x32xf32>
    %c7 = arith.constant 7 : index
    %c0_40 = arith.constant 0 : index
    %130 = vector.load %arg3[%c7, %c0_40] : memref<20x128xf32, #tpu.memory_space<vmem>>, vector<1x32xf32>
    %131 = vector.broadcast %130 : vector<1x32xf32> to vector<16x32xf32>
    %132 = arith.addf %129, %131 : vector<16x32xf32>
    %133 = arith.addf %132, %107 : vector<16x32xf32>
    %c8 = arith.constant 8 : index
    %c0_41 = arith.constant 0 : index
    %134 = vector.load %arg3[%c8, %c0_41] : memref<20x128xf32, #tpu.memory_space<vmem>>, vector<1x32xf32>
    %c9 = arith.constant 9 : index
    %c0_42 = arith.constant 0 : index
    %135 = vector.load %arg3[%c9, %c0_42] : memref<20x128xf32, #tpu.memory_space<vmem>>, vector<1x32xf32>
    %cst_43 = arith.constant dense<0.000000e+00> : vector<16xf32>
    %136 = vector.multi_reduction <add>, %133, %cst_43 [1] : vector<16x32xf32> to vector<16xf32>
    %137 = vector.shape_cast %136 : vector<16xf32> to vector<16x1xf32>
    %cst_44 = arith.constant 3.200000e+01 : f32
    %138 = vector.broadcast %cst_44 : f32 to vector<16x1xf32>
    %139 = arith.divf %137, %138 : vector<16x1xf32>
    %140 = vector.broadcast %139 : vector<16x1xf32> to vector<16x32xf32>
    %141 = arith.subf %133, %140 : vector<16x32xf32>
    %142 = arith.mulf %141, %141 : vector<16x32xf32>
    %cst_45 = arith.constant dense<0.000000e+00> : vector<16xf32>
    %143 = vector.multi_reduction <add>, %142, %cst_45 [1] : vector<16x32xf32> to vector<16xf32>
    %144 = vector.shape_cast %143 : vector<16xf32> to vector<16x1xf32>
    %cst_46 = arith.constant 3.200000e+01 : f32
    %145 = vector.broadcast %cst_46 : f32 to vector<16x1xf32>
    %146 = arith.divf %144, %145 : vector<16x1xf32>
    %147 = vector.broadcast %139 : vector<16x1xf32> to vector<16x32xf32>
    %148 = arith.subf %133, %147 : vector<16x32xf32>
    %cst_47 = arith.constant 9.99999996E-13 : f32
    %149 = vector.broadcast %cst_47 : f32 to vector<16x1xf32>
    %150 = arith.addf %146, %149 : vector<16x1xf32>
    %151 = math.rsqrt %150 : vector<16x1xf32>
    %152 = vector.broadcast %151 : vector<16x1xf32> to vector<16x32xf32>
    %153 = arith.mulf %148, %152 : vector<16x32xf32>
    %154 = vector.broadcast %134 : vector<1x32xf32> to vector<16x32xf32>
    %155 = arith.mulf %153, %154 : vector<16x32xf32>
    %156 = vector.broadcast %135 : vector<1x32xf32> to vector<16x32xf32>
    %157 = arith.addf %155, %156 : vector<16x32xf32>
    %158 = arith.truncf %157 : vector<16x32xf32> to vector<16x32xbf16>
    %c32 = arith.constant 32 : index
    %c0_48 = arith.constant 0 : index
    %159 = vector.load %arg2[%c32, %c0_48] : memref<384x128xbf16, #tpu.memory_space<vmem>>, vector<32x96xbf16>
    %cst_49 = arith.constant dense<0.000000e+00> : vector<16x96xf32>
    %160 = tpu.matmul %158, %159, %cst_49 {dimension_numbers = #tpu.dot_dimension_numbers<[1], [0], [0], [1], [0, 0, 1, 1], [], []>} : vector<16x32xbf16>, vector<32x96xbf16>, vector<16x96xf32> -> vector<16x96xf32>
    %c10 = arith.constant 10 : index
    %c0_50 = arith.constant 0 : index
    %161 = vector.load %arg3[%c10, %c0_50] : memref<20x128xf32, #tpu.memory_space<vmem>>, vector<1x96xf32>
    %162 = vector.broadcast %161 : vector<1x96xf32> to vector<16x96xf32>
    %163 = arith.addf %160, %162 : vector<16x96xf32>
    %164 = vector.extract_strided_slice %163 {offsets = [0, 0], sizes = [16, 32], strides = [1, 1]} : vector<16x96xf32> to vector<16x32xf32>
    %165 = vector.extract_strided_slice %164 {offsets = [0, 0], sizes = [16, 16], strides = [1, 1]} : vector<16x32xf32> to vector<16x16xf32>
    %166 = vector.shape_cast %165 : vector<16x16xf32> to vector<2x8x16xf32>
    %167 = vector.extract_strided_slice %164 {offsets = [0, 16], sizes = [16, 16], strides = [1, 1]} : vector<16x32xf32> to vector<16x16xf32>
    %168 = vector.shape_cast %167 : vector<16x16xf32> to vector<2x8x16xf32>
    %169 = tpu.concatenate %166, %168 in 0 : vector<2x8x16xf32>, vector<2x8x16xf32> -> vector<4x8x16xf32>
    %170 = vector.extract_strided_slice %163 {offsets = [0, 32], sizes = [16, 32], strides = [1, 1]} : vector<16x96xf32> to vector<16x32xf32>
    %171 = vector.extract_strided_slice %170 {offsets = [0, 0], sizes = [16, 16], strides = [1, 1]} : vector<16x32xf32> to vector<16x16xf32>
    %172 = vector.shape_cast %171 : vector<16x16xf32> to vector<2x8x16xf32>
    %173 = vector.extract_strided_slice %170 {offsets = [0, 16], sizes = [16, 16], strides = [1, 1]} : vector<16x32xf32> to vector<16x16xf32>
    %174 = vector.shape_cast %173 : vector<16x16xf32> to vector<2x8x16xf32>
    %175 = tpu.concatenate %172, %174 in 0 : vector<2x8x16xf32>, vector<2x8x16xf32> -> vector<4x8x16xf32>
    %176 = vector.extract_strided_slice %163 {offsets = [0, 64], sizes = [16, 32], strides = [1, 1]} : vector<16x96xf32> to vector<16x32xf32>
    %177 = vector.extract_strided_slice %176 {offsets = [0, 0], sizes = [16, 16], strides = [1, 1]} : vector<16x32xf32> to vector<16x16xf32>
    %178 = vector.shape_cast %177 : vector<16x16xf32> to vector<2x8x16xf32>
    %179 = vector.extract_strided_slice %176 {offsets = [0, 16], sizes = [16, 16], strides = [1, 1]} : vector<16x32xf32> to vector<16x16xf32>
    %180 = vector.shape_cast %179 : vector<16x16xf32> to vector<2x8x16xf32>
    %181 = tpu.concatenate %178, %180 in 0 : vector<2x8x16xf32>, vector<2x8x16xf32> -> vector<4x8x16xf32>
    "tpu.trace_start"() <{level = 10 : i32, message = "bqd,bkd->bqk"}> : () -> ()
    %cst_51 = arith.constant dense<0.000000e+00> : vector<4x8x8xf32>
    %182 = tpu.matmul %169, %175, %cst_51 {dimension_numbers = #tpu.dot_dimension_numbers<[2], [2], [1], [1], [0, 0, 0, 1, 1, 1], [0], [0]>} : vector<4x8x16xf32>, vector<4x8x16xf32>, vector<4x8x8xf32> -> vector<4x8x8xf32>
    "tpu.trace_stop"() : () -> ()
    %cst_52 = arith.constant 2.500000e-01 : f32
    %183 = vector.broadcast %cst_52 : f32 to vector<4x8x8xf32>
    %184 = arith.mulf %182, %183 : vector<4x8x8xf32>
    %185 = vector.broadcast %31 : vector<4x1x8xf32> to vector<4x8x8xf32>
    %186 = arith.addf %184, %185 : vector<4x8x8xf32>
    %cst_53 = arith.constant dense<0xFF800000> : vector<4x8xf32>
    %187 = vector.multi_reduction <maximumf>, %186, %cst_53 [2] : vector<4x8x8xf32> to vector<4x8xf32>
    %188 = vector.shape_cast %187 : vector<4x8xf32> to vector<4x8x1xf32>
    %189 = vector.broadcast %188 : vector<4x8x1xf32> to vector<4x8x8xf32>
    %190 = arith.subf %186, %189 : vector<4x8x8xf32>
    %191 = math.exp %190 : vector<4x8x8xf32>
    %cst_54 = arith.constant dense<0.000000e+00> : vector<4x8xf32>
    %192 = vector.multi_reduction <add>, %191, %cst_54 [2] : vector<4x8x8xf32> to vector<4x8xf32>
    %193 = vector.shape_cast %192 : vector<4x8xf32> to vector<4x8x1xf32>
    %194 = tpu.reciprocal %193 {approx = true} : vector<4x8x1xf32> -> vector<4x8x1xf32>
    %195 = vector.broadcast %194 : vector<4x8x1xf32> to vector<4x8x8xf32>
    %196 = arith.mulf %191, %195 : vector<4x8x8xf32>
    "tpu.trace_start"() <{level = 10 : i32, message = "bqk,bkd->bqd"}> : () -> ()
    %cst_55 = arith.constant dense<0.000000e+00> : vector<4x8x16xf32>
    %197 = tpu.matmul %196, %181, %cst_55 {dimension_numbers = #tpu.dot_dimension_numbers<[2], [1], [1], [2], [0, 0, 0, 1, 1, 2], [0], [0]>} : vector<4x8x8xf32>, vector<4x8x16xf32>, vector<4x8x16xf32> -> vector<4x8x16xf32>
    "tpu.trace_stop"() : () -> ()
    %198 = vector.extract_strided_slice %197 {offsets = [0, 0, 0], sizes = [2, 8, 16], strides = [1, 1, 1]} : vector<4x8x16xf32> to vector<2x8x16xf32>
    %199 = vector.shape_cast %198 : vector<2x8x16xf32> to vector<16x16xf32>
    %200 = vector.extract_strided_slice %197 {offsets = [2, 0, 0], sizes = [2, 8, 16], strides = [1, 1, 1]} : vector<4x8x16xf32> to vector<2x8x16xf32>
    %201 = vector.shape_cast %200 : vector<2x8x16xf32> to vector<16x16xf32>
    %202 = tpu.concatenate %199, %201 in 1 : vector<16x16xf32>, vector<16x16xf32> -> vector<16x32xf32>
    %203 = arith.truncf %202 : vector<16x32xf32> to vector<16x32xbf16>
    %c96 = arith.constant 96 : index
    %c0_56 = arith.constant 0 : index
    %204 = vector.load %arg2[%c96, %c0_56] : memref<384x128xbf16, #tpu.memory_space<vmem>>, vector<32x32xbf16>
    %cst_57 = arith.constant dense<0.000000e+00> : vector<16x32xf32>
    %205 = tpu.matmul %203, %204, %cst_57 {dimension_numbers = #tpu.dot_dimension_numbers<[1], [0], [0], [1], [0, 0, 1, 1], [], []>} : vector<16x32xbf16>, vector<32x32xbf16>, vector<16x32xf32> -> vector<16x32xf32>
    %c11 = arith.constant 11 : index
    %c0_58 = arith.constant 0 : index
    %206 = vector.load %arg3[%c11, %c0_58] : memref<20x128xf32, #tpu.memory_space<vmem>>, vector<1x32xf32>
    %207 = vector.broadcast %206 : vector<1x32xf32> to vector<16x32xf32>
    %208 = arith.addf %205, %207 : vector<16x32xf32>
    %209 = arith.addf %208, %157 : vector<16x32xf32>
    %c12 = arith.constant 12 : index
    %c0_59 = arith.constant 0 : index
    %210 = vector.load %arg3[%c12, %c0_59] : memref<20x128xf32, #tpu.memory_space<vmem>>, vector<1x32xf32>
    %c13 = arith.constant 13 : index
    %c0_60 = arith.constant 0 : index
    %211 = vector.load %arg3[%c13, %c0_60] : memref<20x128xf32, #tpu.memory_space<vmem>>, vector<1x32xf32>
    %cst_61 = arith.constant dense<0.000000e+00> : vector<16xf32>
    %212 = vector.multi_reduction <add>, %209, %cst_61 [1] : vector<16x32xf32> to vector<16xf32>
    %213 = vector.shape_cast %212 : vector<16xf32> to vector<16x1xf32>
    %cst_62 = arith.constant 3.200000e+01 : f32
    %214 = vector.broadcast %cst_62 : f32 to vector<16x1xf32>
    %215 = arith.divf %213, %214 : vector<16x1xf32>
    %216 = vector.broadcast %215 : vector<16x1xf32> to vector<16x32xf32>
    %217 = arith.subf %209, %216 : vector<16x32xf32>
    %218 = arith.mulf %217, %217 : vector<16x32xf32>
    %cst_63 = arith.constant dense<0.000000e+00> : vector<16xf32>
    %219 = vector.multi_reduction <add>, %218, %cst_63 [1] : vector<16x32xf32> to vector<16xf32>
    %220 = vector.shape_cast %219 : vector<16xf32> to vector<16x1xf32>
    %cst_64 = arith.constant 3.200000e+01 : f32
    %221 = vector.broadcast %cst_64 : f32 to vector<16x1xf32>
    %222 = arith.divf %220, %221 : vector<16x1xf32>
    %223 = vector.broadcast %215 : vector<16x1xf32> to vector<16x32xf32>
    %224 = arith.subf %209, %223 : vector<16x32xf32>
    %cst_65 = arith.constant 9.99999996E-13 : f32
    %225 = vector.broadcast %cst_65 : f32 to vector<16x1xf32>
    %226 = arith.addf %222, %225 : vector<16x1xf32>
    %227 = math.rsqrt %226 : vector<16x1xf32>
    %228 = vector.broadcast %227 : vector<16x1xf32> to vector<16x32xf32>
    %229 = arith.mulf %224, %228 : vector<16x32xf32>
    %230 = vector.broadcast %210 : vector<1x32xf32> to vector<16x32xf32>
    %231 = arith.mulf %229, %230 : vector<16x32xf32>
    %232 = vector.broadcast %211 : vector<1x32xf32> to vector<16x32xf32>
    %233 = arith.addf %231, %232 : vector<16x32xf32>
    %234 = arith.truncf %233 : vector<16x32xf32> to vector<16x32xbf16>
    %c160 = arith.constant 160 : index
    %c0_66 = arith.constant 0 : index
    %235 = vector.load %arg2[%c160, %c0_66] : memref<384x128xbf16, #tpu.memory_space<vmem>>, vector<32x64xbf16>
    %cst_67 = arith.constant dense<0.000000e+00> : vector<16x64xf32>
    %236 = tpu.matmul %234, %235, %cst_67 {dimension_numbers = #tpu.dot_dimension_numbers<[1], [0], [0], [1], [0, 0, 1, 1], [], []>} : vector<16x32xbf16>, vector<32x64xbf16>, vector<16x64xf32> -> vector<16x64xf32>
    %c14 = arith.constant 14 : index
    %c0_68 = arith.constant 0 : index
    %237 = vector.load %arg3[%c14, %c0_68] : memref<20x128xf32, #tpu.memory_space<vmem>>, vector<1x64xf32>
    %238 = vector.broadcast %237 : vector<1x64xf32> to vector<16x64xf32>
    %239 = arith.addf %236, %238 : vector<16x64xf32>
    %cst_69 = arith.constant 5.000000e-01 : f32
    %240 = vector.broadcast %cst_69 : f32 to vector<16x64xf32>
    %241 = arith.mulf %240, %239 : vector<16x64xf32>
    %cst_70 = arith.constant 4.471500e-02 : f32
    %242 = vector.broadcast %cst_70 : f32 to vector<16x64xf32>
    %243 = arith.mulf %242, %239 : vector<16x64xf32>
    %244 = arith.mulf %243, %239 : vector<16x64xf32>
    %245 = arith.mulf %244, %239 : vector<16x64xf32>
    %246 = arith.addf %239, %245 : vector<16x64xf32>
    %cst_71 = arith.constant 0.797884583 : f32
    %247 = vector.broadcast %cst_71 : f32 to vector<16x64xf32>
    %248 = arith.mulf %247, %246 : vector<16x64xf32>
    %249 = math.tanh %248 : vector<16x64xf32>
    %cst_72 = arith.constant 1.000000e+00 : f32
    %250 = vector.broadcast %cst_72 : f32 to vector<16x64xf32>
    %251 = arith.addf %250, %249 : vector<16x64xf32>
    %252 = arith.mulf %241, %251 : vector<16x64xf32>
    %253 = arith.truncf %252 : vector<16x64xf32> to vector<16x64xbf16>
    %c256 = arith.constant 256 : index
    %c0_73 = arith.constant 0 : index
    %254 = vector.load %arg2[%c256, %c0_73] : memref<384x128xbf16, #tpu.memory_space<vmem>>, vector<64x32xbf16>
    %cst_74 = arith.constant dense<0.000000e+00> : vector<16x32xf32>
    %255 = tpu.matmul %253, %254, %cst_74 {dimension_numbers = #tpu.dot_dimension_numbers<[1], [0], [0], [1], [0, 0, 1, 1], [], []>} : vector<16x64xbf16>, vector<64x32xbf16>, vector<16x32xf32> -> vector<16x32xf32>
    %c15 = arith.constant 15 : index
    %c0_75 = arith.constant 0 : index
    %256 = vector.load %arg3[%c15, %c0_75] : memref<20x128xf32, #tpu.memory_space<vmem>>, vector<1x32xf32>
    %257 = vector.broadcast %256 : vector<1x32xf32> to vector<16x32xf32>
    %258 = arith.addf %255, %257 : vector<16x32xf32>
    %259 = arith.addf %258, %233 : vector<16x32xf32>
    %c16 = arith.constant 16 : index
    %c0_76 = arith.constant 0 : index
    %260 = vector.load %arg3[%c16, %c0_76] : memref<20x128xf32, #tpu.memory_space<vmem>>, vector<1x32xf32>
    %c17 = arith.constant 17 : index
    %c0_77 = arith.constant 0 : index
    %261 = vector.load %arg3[%c17, %c0_77] : memref<20x128xf32, #tpu.memory_space<vmem>>, vector<1x32xf32>
    %cst_78 = arith.constant dense<0.000000e+00> : vector<16xf32>
    %262 = vector.multi_reduction <add>, %259, %cst_78 [1] : vector<16x32xf32> to vector<16xf32>
    %263 = vector.shape_cast %262 : vector<16xf32> to vector<16x1xf32>
    %cst_79 = arith.constant 3.200000e+01 : f32
    %264 = vector.broadcast %cst_79 : f32 to vector<16x1xf32>
    %265 = arith.divf %263, %264 : vector<16x1xf32>
    %266 = vector.broadcast %265 : vector<16x1xf32> to vector<16x32xf32>
    %267 = arith.subf %259, %266 : vector<16x32xf32>
    %268 = arith.mulf %267, %267 : vector<16x32xf32>
    %cst_80 = arith.constant dense<0.000000e+00> : vector<16xf32>
    %269 = vector.multi_reduction <add>, %268, %cst_80 [1] : vector<16x32xf32> to vector<16xf32>
    %270 = vector.shape_cast %269 : vector<16xf32> to vector<16x1xf32>
    %cst_81 = arith.constant 3.200000e+01 : f32
    %271 = vector.broadcast %cst_81 : f32 to vector<16x1xf32>
    %272 = arith.divf %270, %271 : vector<16x1xf32>
    %273 = vector.broadcast %265 : vector<16x1xf32> to vector<16x32xf32>
    %274 = arith.subf %259, %273 : vector<16x32xf32>
    %cst_82 = arith.constant 9.99999996E-13 : f32
    %275 = vector.broadcast %cst_82 : f32 to vector<16x1xf32>
    %276 = arith.addf %272, %275 : vector<16x1xf32>
    %277 = math.rsqrt %276 : vector<16x1xf32>
    %278 = vector.broadcast %277 : vector<16x1xf32> to vector<16x32xf32>
    %279 = arith.mulf %274, %278 : vector<16x32xf32>
    %280 = vector.broadcast %260 : vector<1x32xf32> to vector<16x32xf32>
    %281 = arith.mulf %279, %280 : vector<16x32xf32>
    %282 = vector.broadcast %261 : vector<1x32xf32> to vector<16x32xf32>
    %283 = arith.addf %281, %282 : vector<16x32xf32>
    %284 = vector.shape_cast %283 : vector<16x32xf32> to vector<2x8x32xf32>
    %285 = vector.extract_strided_slice %284 {offsets = [0, 0, 0], sizes = [2, 1, 32], strides = [1, 1, 1]} : vector<2x8x32xf32> to vector<2x1x32xf32>
    %286 = vector.shape_cast %285 : vector<2x1x32xf32> to vector<2x32xf32>
    %287 = arith.truncf %286 : vector<2x32xf32> to vector<2x32xbf16>
    %c320 = arith.constant 320 : index
    %c0_83 = arith.constant 0 : index
    %288 = vector.load %arg2[%c320, %c0_83] : memref<384x128xbf16, #tpu.memory_space<vmem>>, vector<32x128xbf16>
    %cst_84 = arith.constant dense<0.000000e+00> : vector<2x128xf32>
    %289 = tpu.matmul %287, %288, %cst_84 {dimension_numbers = #tpu.dot_dimension_numbers<[1], [0], [0], [1], [0, 0, 1, 1], [], []>} : vector<2x32xbf16>, vector<32x128xbf16>, vector<2x128xf32> -> vector<2x128xf32>
    %c18 = arith.constant 18 : index
    %c0_85 = arith.constant 0 : index
    %290 = vector.load %arg3[%c18, %c0_85] : memref<20x128xf32, #tpu.memory_space<vmem>>, vector<1x128xf32>
    %291 = vector.broadcast %290 : vector<1x128xf32> to vector<2x128xf32>
    %292 = arith.addf %289, %291 : vector<2x128xf32>
    %293 = math.tanh %292 : vector<2x128xf32>
    %c0_86 = arith.constant 0 : index
    %c0_87 = arith.constant 0 : index
    %294 = vector.load %arg5[%c0_86, %c0_87] : memref<2x128xf32, #tpu.memory_space<vmem>>, vector<2x128xf32>
    tpu.vector_store %arg5[%c0_86, %c0_87], %293 {strides = array<i32>} : memref<2x128xf32, #tpu.memory_space<vmem>>, vector<2x128xf32>,
    %295 = vector.extract_strided_slice %293 {offsets = [0, 0], sizes = [2, 32], strides = [1, 1]} : vector<2x128xf32> to vector<2x32xf32>
    %296 = arith.truncf %295 : vector<2x32xf32> to vector<2x32xbf16>
    %c352 = arith.constant 352 : index
    %c0_88 = arith.constant 0 : index
    %297 = vector.load %arg2[%c352, %c0_88] : memref<384x128xbf16, #tpu.memory_space<vmem>>, vector<32x128xbf16>
    %cst_89 = arith.constant dense<0.000000e+00> : vector<2x128xf32>
    %298 = tpu.matmul %296, %297, %cst_89 {dimension_numbers = #tpu.dot_dimension_numbers<[1], [0], [0], [1], [0, 0, 1, 1], [], []>} : vector<2x32xbf16>, vector<32x128xbf16>, vector<2x128xf32> -> vector<2x128xf32>
    %c19 = arith.constant 19 : index
    %c0_90 = arith.constant 0 : index
    %299 = vector.load %arg3[%c19, %c0_90] : memref<20x128xf32, #tpu.memory_space<vmem>>, vector<1x128xf32>
    %300 = vector.broadcast %299 : vector<1x128xf32> to vector<2x128xf32>
    %301 = arith.addf %298, %300 : vector<2x128xf32>
    %c0_91 = arith.constant 0 : index
    %c0_92 = arith.constant 0 : index
    %302 = vector.load %arg4[%c0_91, %c0_92] : memref<2x128xf32, #tpu.memory_space<vmem>>, vector<2x128xf32>
    tpu.vector_store %arg4[%c0_91, %c0_92], %301 {strides = array<i32>} : memref<2x128xf32, #tpu.memory_space<vmem>>, vector<2x128xf32>,
    return
  }
}

</mosaic_0001>

<llo_original>
// kernel: forward.1
$region0: #{forward.1}
  #allocation0 [shape = 'u32[]', space=smem, size = 0x4, offset = 0x4, fixed_abs, tag = 'smem constant byte address 0x4 - core index']
  #allocation1 [shape = 'u32[144,128]{1,0:T(1,128)}', space=vmem, size = 0x12000, scoped, tag = 'internal scratch']
  %s0 = inlined_call_operand.vmem [shape: f32[16,32], index: 0, kind: input, shape index: {}]
  %s1 = inlined_call_operand.vmem [shape: f32[2,8], index: 1, kind: input, shape index: {}]
  %s2 = inlined_call_operand.vmem [shape: bf16[384,128], index: 2, kind: input, shape index: {}]
  %s3 = inlined_call_operand.vmem [shape: f32[20,128], index: 3, kind: input, shape index: {}]
  %s4 = inlined_call_operand.hbm [shape: f32[2,128], index: 4, kind: output, shape index: {0}]
  %s5 = inlined_call_operand.hbm [shape: f32[2,128], index: 5, kind: output, shape index: {1}]
  %6 = xla_tuple %s4, %s5
  %s7 = sld [smem:[#allocation0]]
  $region34: #{forward.1} parent=0
    _
  %s9 = ssub.s32 1, %s7
  %s10 = scalar_select 0, %s9, %s7
  $region1: #{forward.1} parent=0
    #allocation2 [shape = 'u8[1024]{0}', space=vmem, size = 0x400, scoped, tag = 'output window, operand 0, single buffered']
    #allocation3 [shape = 's32[1]{0}', space=sflag, size = 0x4, scoped, tag = 'scoped memory for forward.1']
    #allocation4 [shape = 'u8[1024]{0}', space=vmem, size = 0x400, scoped, tag = 'output window, operand 1, single buffered']
    #allocation5 [shape = 's32[1]{0}', space=sflag, size = 0x4, scoped, tag = 'scoped memory for forward.1']
    %11 = vsyncpa [#allocation3], 0
    %12 = vsyncpa [#allocation5], 0
    // Predicated region
    $region2: #{forward.1} parent=1 // pred_check
      _
    $region3: #{forward.1} parent=1 // pred_check_branch
      %14 = sbr.rel (0) target = $region5
    $region4: #{forward.1} parent=1 // pred_region
      _
    $region5: #{forward.1} parent=1 // pred_fallthru
      _
    // Predicated region
    $region6: #{forward.1} parent=1 // pred_check
      _
    $region7: #{forward.1} parent=1 // pred_check_branch
      %16 = sbr.rel (0) target = $region9
    $region8: #{forward.1} parent=1 // pred_region
      _
    $region9: #{forward.1} parent=1 // pred_fallthru
      _
    // Predicated region
    $region10: #{forward.1} parent=1 // pred_check
      _
    $region11: #{forward.1} parent=1 // pred_check_branch
      %18 = sbr.rel (0) target = $region13
    $region12: #{forward.1} parent=1 // pred_region
      _
    $region13: #{forward.1} parent=1 // pred_fallthru
      _
    // Predicated region
    $region14: #{forward.1} parent=1 // pred_check
      _
    $region15: #{forward.1} parent=1 // pred_check_branch
      %20 = sbr.rel (0) target = $region17
    $region16: #{forward.1} parent=1 // pred_region
      _
    $region17: #{forward.1} parent=1 // pred_fallthru
      _
    %v22 = vld [vmem:[%s0] sm:$0xff]
    %v23 = vld [vmem:[%s0 + $0x8] sm:$0xff]
    %v24 = vld [vmem:[%s3] sm:$0x1]
    %v25 = vld [vmem:[%s3 + $0x1] sm:$0x1]
    %vm26 = vcmask 261120
    %v27 = vsel %vm26, %v22, 0.0
    %28 = vadd.xlane.f32.xlu0 %v27
    %v29 = vpop.xlane.xlu0 %28
    %v30 = vsel %vm26, %v23, 0.0
    %31 = vadd.xlane.f32.xlu0 %v30
    %v32 = vpop.xlane.xlu0 %31
    %v33 = vrcp.pop 32.0
    %v34 = vmul.f32 %v29, %v33
    %v35 = vmul.f32 %v32, %v33
    %v36 = vsub.f32 %v22, %v34
    %v37 = vsub.f32 %v23, %v35
    %v38 = vmul.f32 %v36, %v36
    %v39 = vmul.f32 %v37, %v37
    %v40 = vsel %vm26, %v38, 0.0
    %41 = vadd.xlane.f32.xlu0 %v40
    %v42 = vpop.xlane.xlu0 %41
    %v43 = vsel %vm26, %v39, 0.0
    %44 = vadd.xlane.f32.xlu0 %v43
    %v45 = vpop.xlane.xlu0 %44
    %v46 = vmul.f32 %v42, %v33
    %v47 = vmul.f32 %v45, %v33
    %v48 = vadd.f32 %v46, 1e-12
    %v49 = vadd.f32 %v47, 1e-12
    %v50 = vrsqrt.pop %v48
    %v51 = vrsqrt.pop %v49
    %v52 = vmul.f32 %v36, %v50
    %v53 = vmul.f32 %v37, %v51
    %v54 = vlaneseq
    %v55 = vshrl.u32 %v54, 7
    %v56 = vsub.s32 0, %v55
    %v57 = vrot.slane %v24, %v56
    %v58 = vmul.f32 %v52, %v57
    %v59 = vmul.f32 %v53, %v57
    %v60 = vlaneseq
    %v61 = vshrl.u32 %v60, 7
    %v62 = vsub.s32 0, %v61
    %v63 = vrot.slane %v25, %v62
    %v64 = vadd.f32 %v58, %v63
    %v65 = vadd.f32 %v59, %v63
    %v66 = vld [vmem:[%s1] sm:$0x3]
    %v67 = vsub.f32 1.0, %v66
    %v68 = vmul.f32 %v67, -1e+09
    %v71 = vunpack.c.l.s4 1966171168
    %v72 = vunpack.c.0.s8 %v71
    %v73 = vlaneseq
    %v74 = vshrl.u32 %v73, 7
    %v75 = vsub.s32 %v72, %v74
    %v76 = vrot.slane %v68, %v75
    %v77 = vcombine.high %v76, %v76
    %v79 = vunpack.c.l.s4 1966171168
    %v80 = vunpack.c.0.s8 %v79
    %v81 = vlaneseq
    %v82 = vshrl.u32 %v81, 7
    %v83 = vsub.s32 %v80, %v82
    %v84 = vrot.slane %v76, %v83
    %v86 = vunpack.c.l.s4 1966171168
    %v87 = vunpack.c.0.s8 %v86
    %v88 = vlaneseq
    %v89 = vshrl.u32 %v88, 7
    %v90 = vsub.s32 %v87, %v89
    %v91 = vrot.slane %v77, %v90
    %v92 = vpack.c.bf16 %v65, %v64
    %v93 = vld [vmem:[%s2] sm:$0xf]
    %v94 = vld [vmem:[%s2 + $0x4] sm:$0xf]
    %v95 = vld [vmem:[%s2 + $0x8] sm:$0xf]
    %v96 = vld [vmem:[%s2 + $0xc] sm:$0xf]
    %v97 = vld [vmem:[%s3 + $0x2] sm:$0x1]
    %v98 = vlaneseq
    %v99 = vshrl.u32 %v98, 7
    %v100 = vsub.s32 0, %v99
    %v101 = vrot.slane %v97, %v100
    %v106 = vunpack.c.l.b16 %v93
    %v107 = vunpack.c.l.b16 %v94
    %v108 = vunpack.c.l.b16 %v95
    %v109 = vunpack.c.l.b16 %v96
    %v110 = vpack.c.b16 %v107, %v106
    %v111 = vpack.c.b16 %v109, %v108
    %v115 = vsel %vm26, %v92, 0
    %117 = vmatprep.subr.bf16.mxu0 0
    %118 = vmatpush1.bf16.msra.mxu0 0
    %119 = vmatprep.subr.bf16.mxu0 0
    %120 = vmatpush1.bf16.msra.mxu0 0
    %121 = vmatprep.subr.bf16.mxu0 0
    %122 = vmatpush1.bf16.msra.mxu0 0
    %123 = vmatprep.subr.bf16.mxu0 0
    %124 = vmatpush1.bf16.msra.mxu0 0
    %125 = vmatprep.subr.bf16.mxu0 0
    %126 = vmatpush1.bf16.msra.mxu0 0
    %127 = vmatprep.subr.bf16.mxu0 0
    %128 = vmatpush1.bf16.msra.mxu0 0
    %129 = vmatprep.subr.bf16.mxu0 0
    %130 = vmatpush1.bf16.msra.mxu0 %v111
    %131 = vmatprep.subr.bf16.mxu0 0
    %132 = vmatpush1.bf16.msra.mxu0 %v110
    %133 = vmatprep.subr.bf16.mxu0 0
    %134 = vmatpush2.bf16.msra.mxu0 0
    %135 = vmatprep.subr.bf16.mxu0 0
    %136 = vmatpush2.bf16.msra.mxu0 0
    %137 = vmatprep.subr.bf16.mxu0 0
    %138 = vmatpush2.bf16.msra.mxu0 0
    %139 = vmatprep.subr.bf16.mxu0 0
    %140 = vmatpush2.bf16.msra.mxu0 0
    %141 = vmatprep.subr.bf16.mxu0 0
    %142 = vmatpush2.bf16.msra.mxu0 0
    %143 = vmatprep.subr.bf16.mxu0 0
    %144 = vmatpush2.bf16.msra.mxu0 0
    %145 = vmatprep.subr.bf16.mxu0 0
    %146 = vmatpush2.bf16.msra.mxu0 0
    %147 = vmatprep.subr.bf16.mxu0 0
    %148 = vmatpush2.bf16.msra.mxu0 0
    %149 = vmatprep.mubr.bf16.mxu0 0
    %150 = vmatmul.mubr.bf16.gmra.mxu0 %v115
    %v151 = vpop.f32.mrf.mxu0
    %v152 = vadd.f32 %v101, %v151
    %v153 = vpop.f32.mrf.mxu0
    %v154 = vpop.f32.mrf.mxu0
    %v155 = vadd.f32 %v101, %v154
    %v156 = vpop.f32.mrf.mxu0
    %157 = vdwg.mxu0
    %160 = vrot.lane.b32.xlu0 %v152, 112
    %v161 = vpop.permute.xlu0 %160
    %162 = vrot.lane.b32.xlu0 %v155, 112
    %v163 = vpop.permute.xlu0 %162
    %164 = vrot.lane.b32.xlu0 %v152, 96
    %v165 = vpop.permute.xlu0 %164
    %vm166 = vcmask 130048
    %v167 = vsel %vm166, %v152, 0
    %v169 = vsel %vm166, %v165, 0
    %171 = vmatprep.subr.mxu0 0.0
    %172 = vmatpush1.xpose.msra.mxu0 0.0
    %173 = vmatprep.subr.mxu0 0.0
    %174 = vmatpush1.xpose.msra.mxu0 0.0
    %175 = vmatprep.subr.mxu0 0.0
    %176 = vmatpush1.xpose.msra.mxu0 0.0
    %177 = vmatprep.subr.mxu0 0.0
    %178 = vmatpush1.xpose.msra.mxu0 0.0
    %179 = vmatprep.subr.mxu0 0.0
    %180 = vmatpush1.xpose.msra.mxu0 0.0
    %181 = vmatprep.subr.mxu0 0.0
    %182 = vmatpush1.xpose.msra.mxu0 0.0
    %183 = vmatprep.subr.mxu0 0.0
    %184 = vmatpush1.xpose.msra.mxu0 0.0
    %185 = vmatprep.subr.mxu0 0.0
    %186 = vmatpush1.xpose.msra.mxu0 0.0
    %187 = vmatprep.subr.mxu0 0.0
    %188 = vmatpush1.xpose.msra.mxu0 0.0
    %189 = vmatprep.subr.mxu0 0.0
    %190 = vmatpush1.xpose.msra.mxu0 0.0
    %191 = vmatprep.subr.mxu0 0.0
    %192 = vmatpush1.xpose.msra.mxu0 0.0
    %193 = vmatprep.subr.mxu0 0.0
    %194 = vmatpush1.xpose.msra.mxu0 0.0
    %195 = vmatprep.subr.mxu0 0.0
    %196 = vmatpush1.xpose.msra.mxu0 0.0
    %197 = vmatprep.subr.mxu0 0.0
    %198 = vmatpush1.xpose.msra.mxu0 0.0
    %199 = vmatprep.subr.mxu0 0.0
    %200 = vmatpush1.xpose.msra.mxu0 0.0
    %201 = vmatprep.subr.mxu0 0.0
    %202 = vmatpush1.xpose.msra.mxu0 %v169
    %203 = vmatprep.subr.mxu0 0.0
    %204 = vmatpush2.xpose.msra.mxu0 0.0
    %205 = vmatprep.subr.mxu0 0.0
    %206 = vmatpush2.xpose.msra.mxu0 0.0
    %207 = vmatprep.subr.mxu0 0.0
    %208 = vmatpush2.xpose.msra.mxu0 0.0
    %209 = vmatprep.subr.mxu0 0.0
    %210 = vmatpush2.xpose.msra.mxu0 0.0
    %211 = vmatprep.subr.mxu0 0.0
    %212 = vmatpush2.xpose.msra.mxu0 0.0
    %213 = vmatprep.subr.mxu0 0.0
    %214 = vmatpush2.xpose.msra.mxu0 0.0
    %215 = vmatprep.subr.mxu0 0.0
    %216 = vmatpush2.xpose.msra.mxu0 0.0
    %217 = vmatprep.subr.mxu0 0.0
    %218 = vmatpush2.xpose.msra.mxu0 0.0
    %219 = vmatprep.subr.mxu0 0.0
    %220 = vmatpush2.xpose.msra.mxu0 0.0
    %221 = vmatprep.subr.mxu0 0.0
    %222 = vmatpush2.xpose.msra.mxu0 0.0
    %223 = vmatprep.subr.mxu0 0.0
    %224 = vmatpush2.xpose.msra.mxu0 0.0
    %225 = vmatprep.subr.mxu0 0.0
    %226 = vmatpush2.xpose.msra.mxu0 0.0
    %227 = vmatprep.subr.mxu0 0.0
    %228 = vmatpush2.xpose.msra.mxu0 0.0
    %229 = vmatprep.subr.mxu0 0.0
    %230 = vmatpush2.xpose.msra.mxu0 0.0
    %231 = vmatprep.subr.mxu0 0.0
    %232 = vmatpush2.xpose.msra.mxu0 0.0
    %233 = vmatprep.subr.mxu0 0.0
    %234 = vmatpush2.xpose.msra.mxu0 0.0
    %235 = vmatprep.mubr.f32.mxu0 0.0
    %236 = vmatmul.mubr.f32.gmra.mxu0 %v167
    %v237 = vpop.f32.mrf.mxu0
    %v238 = vadd.f32 0.0, %v237
    %v239 = vpop.f32.mrf.mxu0
    %240 = vdwg.mxu0
    %241 = vrot.lane.b32.xlu0 %v155, 96
    %v242 = vpop.permute.xlu0 %241
    %v243 = vsel %vm166, %v155, 0
    %v245 = vsel %vm166, %v242, 0
    %247 = vmatprep.subr.mxu0 0.0
    %248 = vmatpush1.xpose.msra.mxu0 0.0
    %249 = vmatprep.subr.mxu0 0.0
    %250 = vmatpush1.xpose.msra.mxu0 0.0
    %251 = vmatprep.subr.mxu0 0.0
    %252 = vmatpush1.xpose.msra.mxu0 0.0
    %253 = vmatprep.subr.mxu0 0.0
    %254 = vmatpush1.xpose.msra.mxu0 0.0
    %255 = vmatprep.subr.mxu0 0.0
    %256 = vmatpush1.xpose.msra.mxu0 0.0
    %257 = vmatprep.subr.mxu0 0.0
    %258 = vmatpush1.xpose.msra.mxu0 0.0
    %259 = vmatprep.subr.mxu0 0.0
    %260 = vmatpush1.xpose.msra.mxu0 0.0
    %261 = vmatprep.subr.mxu0 0.0
    %262 = vmatpush1.xpose.msra.mxu0 0.0
    %263 = vmatprep.subr.mxu0 0.0
    %264 = vmatpush1.xpose.msra.mxu0 0.0
    %265 = vmatprep.subr.mxu0 0.0
    %266 = vmatpush1.xpose.msra.mxu0 0.0
    %267 = vmatprep.subr.mxu0 0.0
    %268 = vmatpush1.xpose.msra.mxu0 0.0
    %269 = vmatprep.subr.mxu0 0.0
    %270 = vmatpush1.xpose.msra.mxu0 0.0
    %271 = vmatprep.subr.mxu0 0.0
    %272 = vmatpush1.xpose.msra.mxu0 0.0
    %273 = vmatprep.subr.mxu0 0.0
    %274 = vmatpush1.xpose.msra.mxu0 0.0
    %275 = vmatprep.subr.mxu0 0.0
    %276 = vmatpush1.xpose.msra.mxu0 0.0
    %277 = vmatprep.subr.mxu0 0.0
    %278 = vmatpush1.xpose.msra.mxu0 %v245
    %279 = vmatprep.subr.mxu0 0.0
    %280 = vmatpush2.xpose.msra.mxu0 0.0
    %281 = vmatprep.subr.mxu0 0.0
    %282 = vmatpush2.xpose.msra.mxu0 0.0
    %283 = vmatprep.subr.mxu0 0.0
    %284 = vmatpush2.xpose.msra.mxu0 0.0
    %285 = vmatprep.subr.mxu0 0.0
    %286 = vmatpush2.xpose.msra.mxu0 0.0
    %287 = vmatprep.subr.mxu0 0.0
    %288 = vmatpush2.xpose.msra.mxu0 0.0
    %289 = vmatprep.subr.mxu0 0.0
    %290 = vmatpush2.xpose.msra.mxu0 0.0
    %291 = vmatprep.subr.mxu0 0.0
    %292 = vmatpush2.xpose.msra.mxu0 0.0
    %293 = vmatprep.subr.mxu0 0.0
    %294 = vmatpush2.xpose.msra.mxu0 0.0
    %295 = vmatprep.subr.mxu0 0.0
    %296 = vmatpush2.xpose.msra.mxu0 0.0
    %297 = vmatprep.subr.mxu0 0.0
    %298 = vmatpush2.xpose.msra.mxu0 0.0
    %299 = vmatprep.subr.mxu0 0.0
    %300 = vmatpush2.xpose.msra.mxu0 0.0
    %301 = vmatprep.subr.mxu0 0.0
    %302 = vmatpush2.xpose.msra.mxu0 0.0
    %303 = vmatprep.subr.mxu0 0.0
    %304 = vmatpush2.xpose.msra.mxu0 0.0
    %305 = vmatprep.subr.mxu0 0.0
    %306 = vmatpush2.xpose.msra.mxu0 0.0
    %307 = vmatprep.subr.mxu0 0.0
    %308 = vmatpush2.xpose.msra.mxu0 0.0
    %309 = vmatprep.subr.mxu0 0.0
    %310 = vmatpush2.xpose.msra.mxu0 0.0
    %311 = vmatprep.mubr.f32.mxu0 0.0
    %312 = vmatmul.mubr.f32.gmra.mxu0 %v243
    %v313 = vpop.f32.mrf.mxu0
    %v314 = vadd.f32 0.0, %v313
    %v315 = vpop.f32.mrf.mxu0
    %316 = vdwg.mxu0
    %317 = vrot.lane.b32.xlu0 %v161, 96
    %v318 = vpop.permute.xlu0 %317
    %v319 = vsel %vm166, %v161, 0
    %v321 = vsel %vm166, %v318, 0
    %323 = vmatprep.subr.mxu0 0.0
    %324 = vmatpush1.xpose.msra.mxu0 0.0
    %325 = vmatprep.subr.mxu0 0.0
    %326 = vmatpush1.xpose.msra.mxu0 0.0
    %327 = vmatprep.subr.mxu0 0.0
    %328 = vmatpush1.xpose.msra.mxu0 0.0
    %329 = vmatprep.subr.mxu0 0.0
    %330 = vmatpush1.xpose.msra.mxu0 0.0
    %331 = vmatprep.subr.mxu0 0.0
    %332 = vmatpush1.xpose.msra.mxu0 0.0
    %333 = vmatprep.subr.mxu0 0.0
    %334 = vmatpush1.xpose.msra.mxu0 0.0
    %335 = vmatprep.subr.mxu0 0.0
    %336 = vmatpush1.xpose.msra.mxu0 0.0
    %337 = vmatprep.subr.mxu0 0.0
    %338 = vmatpush1.xpose.msra.mxu0 0.0
    %339 = vmatprep.subr.mxu0 0.0
    %340 = vmatpush1.xpose.msra.mxu0 0.0
    %341 = vmatprep.subr.mxu0 0.0
    %342 = vmatpush1.xpose.msra.mxu0 0.0
    %343 = vmatprep.subr.mxu0 0.0
    %344 = vmatpush1.xpose.msra.mxu0 0.0
    %345 = vmatprep.subr.mxu0 0.0
    %346 = vmatpush1.xpose.msra.mxu0 0.0
    %347 = vmatprep.subr.mxu0 0.0
    %348 = vmatpush1.xpose.msra.mxu0 0.0
    %349 = vmatprep.subr.mxu0 0.0
    %350 = vmatpush1.xpose.msra.mxu0 0.0
    %351 = vmatprep.subr.mxu0 0.0
    %352 = vmatpush1.xpose.msra.mxu0 0.0
    %353 = vmatprep.subr.mxu0 0.0
    %354 = vmatpush1.xpose.msra.mxu0 %v321
    %355 = vmatprep.subr.mxu0 0.0
    %356 = vmatpush2.xpose.msra.mxu0 0.0
    %357 = vmatprep.subr.mxu0 0.0
    %358 = vmatpush2.xpose.msra.mxu0 0.0
    %359 = vmatprep.subr.mxu0 0.0
    %360 = vmatpush2.xpose.msra.mxu0 0.0
    %361 = vmatprep.subr.mxu0 0.0
    %362 = vmatpush2.xpose.msra.mxu0 0.0
    %363 = vmatprep.subr.mxu0 0.0
    %364 = vmatpush2.xpose.msra.mxu0 0.0
    %365 = vmatprep.subr.mxu0 0.0
    %366 = vmatpush2.xpose.msra.mxu0 0.0
    %367 = vmatprep.subr.mxu0 0.0
    %368 = vmatpush2.xpose.msra.mxu0 0.0
    %369 = vmatprep.subr.mxu0 0.0
    %370 = vmatpush2.xpose.msra.mxu0 0.0
    %371 = vmatprep.subr.mxu0 0.0
    %372 = vmatpush2.xpose.msra.mxu0 0.0
    %373 = vmatprep.subr.mxu0 0.0
    %374 = vmatpush2.xpose.msra.mxu0 0.0
    %375 = vmatprep.subr.mxu0 0.0
    %376 = vmatpush2.xpose.msra.mxu0 0.0
    %377 = vmatprep.subr.mxu0 0.0
    %378 = vmatpush2.xpose.msra.mxu0 0.0
    %379 = vmatprep.subr.mxu0 0.0
    %380 = vmatpush2.xpose.msra.mxu0 0.0
    %381 = vmatprep.subr.mxu0 0.0
    %382 = vmatpush2.xpose.msra.mxu0 0.0
    %383 = vmatprep.subr.mxu0 0.0
    %384 = vmatpush2.xpose.msra.mxu0 0.0
    %385 = vmatprep.subr.mxu0 0.0
    %386 = vmatpush2.xpose.msra.mxu0 0.0
    %387 = vmatprep.mubr.f32.mxu0 0.0
    %388 = vmatmul.mubr.f32.gmra.mxu0 %v319
    %v389 = vpop.f32.mrf.mxu0
    %v390 = vadd.f32 0.0, %v389
    %v391 = vpop.f32.mrf.mxu0
    %392 = vdwg.mxu0
    %393 = vrot.lane.b32.xlu0 %v163, 96
    %v394 = vpop.permute.xlu0 %393
    %v395 = vsel %vm166, %v163, 0
    %v397 = vsel %vm166, %v394, 0
    %399 = vmatprep.subr.mxu0 0.0
    %400 = vmatpush1.xpose.msra.mxu0 0.0
    %401 = vmatprep.subr.mxu0 0.0
    %402 = vmatpush1.xpose.msra.mxu0 0.0
    %403 = vmatprep.subr.mxu0 0.0
    %404 = vmatpush1.xpose.msra.mxu0 0.0
    %405 = vmatprep.subr.mxu0 0.0
    %406 = vmatpush1.xpose.msra.mxu0 0.0
    %407 = vmatprep.subr.mxu0 0.0
    %408 = vmatpush1.xpose.msra.mxu0 0.0
    %409 = vmatprep.subr.mxu0 0.0
    %410 = vmatpush1.xpose.msra.mxu0 0.0
    %411 = vmatprep.subr.mxu0 0.0
    %412 = vmatpush1.xpose.msra.mxu0 0.0
    %413 = vmatprep.subr.mxu0 0.0
    %414 = vmatpush1.xpose.msra.mxu0 0.0
    %415 = vmatprep.subr.mxu0 0.0
    %416 = vmatpush1.xpose.msra.mxu0 0.0
    %417 = vmatprep.subr.mxu0 0.0
    %418 = vmatpush1.xpose.msra.mxu0 0.0
    %419 = vmatprep.subr.mxu0 0.0
    %420 = vmatpush1.xpose.msra.mxu0 0.0
    %421 = vmatprep.subr.mxu0 0.0
    %422 = vmatpush1.xpose.msra.mxu0 0.0
    %423 = vmatprep.subr.mxu0 0.0
    %424 = vmatpush1.xpose.msra.mxu0 0.0
    %425 = vmatprep.subr.mxu0 0.0
    %426 = vmatpush1.xpose.msra.mxu0 0.0
    %427 = vmatprep.subr.mxu0 0.0
    %428 = vmatpush1.xpose.msra.mxu0 0.0
    %429 = vmatprep.subr.mxu0 0.0
    %430 = vmatpush1.xpose.msra.mxu0 %v397
    %431 = vmatprep.subr.mxu0 0.0
    %432 = vmatpush2.xpose.msra.mxu0 0.0
    %433 = vmatprep.subr.mxu0 0.0
    %434 = vmatpush2.xpose.msra.mxu0 0.0
    %435 = vmatprep.subr.mxu0 0.0
    %436 = vmatpush2.xpose.msra.mxu0 0.0
    %437 = vmatprep.subr.mxu0 0.0
    %438 = vmatpush2.xpose.msra.mxu0 0.0
    %439 = vmatprep.subr.mxu0 0.0
    %440 = vmatpush2.xpose.msra.mxu0 0.0
    %441 = vmatprep.subr.mxu0 0.0
    %442 = vmatpush2.xpose.msra.mxu0 0.0
    %443 = vmatprep.subr.mxu0 0.0
    %444 = vmatpush2.xpose.msra.mxu0 0.0
    %445 = vmatprep.subr.mxu0 0.0
    %446 = vmatpush2.xpose.msra.mxu0 0.0
    %447 = vmatprep.subr.mxu0 0.0
    %448 = vmatpush2.xpose.msra.mxu0 0.0
    %449 = vmatprep.subr.mxu0 0.0
    %450 = vmatpush2.xpose.msra.mxu0 0.0
    %451 = vmatprep.subr.mxu0 0.0
    %452 = vmatpush2.xpose.msra.mxu0 0.0
    %453 = vmatprep.subr.mxu0 0.0
    %454 = vmatpush2.xpose.msra.mxu0 0.0
    %455 = vmatprep.subr.mxu0 0.0
    %456 = vmatpush2.xpose.msra.mxu0 0.0
    %457 = vmatprep.subr.mxu0 0.0
    %458 = vmatpush2.xpose.msra.mxu0 0.0
    %459 = vmatprep.subr.mxu0 0.0
    %460 = vmatpush2.xpose.msra.mxu0 0.0
    %461 = vmatprep.subr.mxu0 0.0
    %462 = vmatpush2.xpose.msra.mxu0 0.0
    %463 = vmatprep.mubr.f32.mxu0 0.0
    %464 = vmatmul.mubr.f32.gmra.mxu0 %v395
    %v465 = vpop.f32.mrf.mxu0
    %v466 = vadd.f32 0.0, %v465
    %v467 = vpop.f32.mrf.mxu0
    %468 = vdwg.mxu0
    %v469 = vmul.f32 %v238, 0.25
    %v470 = vmul.f32 %v314, 0.25
    %v471 = vmul.f32 %v390, 0.25
    %v472 = vmul.f32 %v466, 0.25
    %v473 = vlaneseq
    %v474 = vshrl.u32 %v473, 7
    %v475 = vsub.s32 0, %v474
    %v476 = vrot.slane %v84, %v475
    %v477 = vlaneseq
    %v478 = vshrl.u32 %v477, 7
    %v479 = vsub.s32 0, %v478
    %v480 = vrot.slane %v91, %v479
    %v483 = vadd.f32 %v469, %v476
    %v484 = vadd.f32 %v470, %v480
    %v485 = vadd.f32 %v471, %v476
    %v486 = vadd.f32 %v472, %v480
    %vm487 = vcmask 64512
    %v488 = vsel %vm487, %v483, -inf
    %489 = vmax.xlane.f32.xlu0 %v488
    %v490 = vpop.xlane.xlu0 %489
    %v491 = vsel %vm487, %v484, -inf
    %492 = vmax.xlane.f32.xlu0 %v491
    %v493 = vpop.xlane.xlu0 %492
    %v494 = vsel %vm487, %v485, -inf
    %495 = vmax.xlane.f32.xlu0 %v494
    %v496 = vpop.xlane.xlu0 %495
    %v497 = vsel %vm487, %v486, -inf
    %498 = vmax.xlane.f32.xlu0 %v497
    %v499 = vpop.xlane.xlu0 %498
    %v500 = vsub.f32 %v483, %v490
    %v501 = vsub.f32 %v484, %v493
    %v502 = vsub.f32 %v485, %v496
    %v503 = vsub.f32 %v486, %v499
    %v504 = vmul.f32 %v500, 1.442695
    %v505 = vpow.pop %v504
    %v506 = vmul.f32 %v501, 1.442695
    %v507 = vpow.pop %v506
    %v508 = vmul.f32 %v502, 1.442695
    %v509 = vpow.pop %v508
    %v510 = vmul.f32 %v503, 1.442695
    %v511 = vpow.pop %v510
    %v512 = vsel %vm487, %v505, 0.0
    %513 = vadd.xlane.f32.xlu0 %v512
    %v514 = vpop.xlane.xlu0 %513
    %v515 = vsel %vm487, %v507, 0.0
    %516 = vadd.xlane.f32.xlu0 %v515
    %v517 = vpop.xlane.xlu0 %516
    %v518 = vsel %vm487, %v509, 0.0
    %519 = vadd.xlane.f32.xlu0 %v518
    %v520 = vpop.xlane.xlu0 %519
    %v521 = vsel %vm487, %v511, 0.0
    %522 = vadd.xlane.f32.xlu0 %v521
    %v523 = vpop.xlane.xlu0 %522
    %v524 = vrcp.pop %v514
    %v525 = vrcp.pop %v517
    %v526 = vrcp.pop %v520
    %v527 = vrcp.pop %v523
    %v528 = vmul.f32 %v505, %v524
    %v529 = vmul.f32 %v507, %v525
    %v530 = vmul.f32 %v509, %v526
    %v531 = vmul.f32 %v511, %v527
    %532 = vrot.lane.b32.xlu0 %v152, 64
    %v533 = vpop.permute.xlu0 %532
    %v536 = vsel %vm487, %v528, 0
    %538 = vmatprep.subr.mxu0 0.0
    %539 = vmatpush1.msra.mxu0 0.0
    %540 = vmatprep.subr.mxu0 0.0
    %541 = vmatpush1.msra.mxu0 0.0
    %542 = vmatprep.subr.mxu0 0.0
    %543 = vmatpush1.msra.mxu0 0.0
    %544 = vmatprep.subr.mxu0 0.0
    %545 = vmatpush1.msra.mxu0 0.0
    %546 = vmatprep.subr.mxu0 0.0
    %547 = vmatpush1.msra.mxu0 0.0
    %548 = vmatprep.subr.mxu0 0.0
    %549 = vmatpush1.msra.mxu0 0.0
    %550 = vmatprep.subr.mxu0 0.0
    %551 = vmatpush1.msra.mxu0 0.0
    %552 = vmatprep.subr.mxu0 0.0
    %553 = vmatpush1.msra.mxu0 0.0
    %554 = vmatprep.subr.mxu0 0.0
    %555 = vmatpush1.msra.mxu0 0.0
    %556 = vmatprep.subr.mxu0 0.0
    %557 = vmatpush1.msra.mxu0 0.0
    %558 = vmatprep.subr.mxu0 0.0
    %559 = vmatpush1.msra.mxu0 0.0
    %560 = vmatprep.subr.mxu0 0.0
    %561 = vmatpush1.msra.mxu0 0.0
    %562 = vmatprep.subr.mxu0 0.0
    %563 = vmatpush1.msra.mxu0 0.0
    %564 = vmatprep.subr.mxu0 0.0
    %565 = vmatpush1.msra.mxu0 0.0
    %566 = vmatprep.subr.mxu0 0.0
    %567 = vmatpush1.msra.mxu0 0.0
    %568 = vmatprep.subr.mxu0 0.0
    %569 = vmatpush1.msra.mxu0 %v533
    %570 = vmatprep.subr.mxu0 0.0
    %571 = vmatpush2.msra.mxu0 0.0
    %572 = vmatprep.subr.mxu0 0.0
    %573 = vmatpush2.msra.mxu0 0.0
    %574 = vmatprep.subr.mxu0 0.0
    %575 = vmatpush2.msra.mxu0 0.0
    %576 = vmatprep.subr.mxu0 0.0
    %577 = vmatpush2.msra.mxu0 0.0
    %578 = vmatprep.subr.mxu0 0.0
    %579 = vmatpush2.msra.mxu0 0.0
    %580 = vmatprep.subr.mxu0 0.0
    %581 = vmatpush2.msra.mxu0 0.0
    %582 = vmatprep.subr.mxu0 0.0
    %583 = vmatpush2.msra.mxu0 0.0
    %584 = vmatprep.subr.mxu0 0.0
    %585 = vmatpush2.msra.mxu0 0.0
    %586 = vmatprep.subr.mxu0 0.0
    %587 = vmatpush2.msra.mxu0 0.0
    %588 = vmatprep.subr.mxu0 0.0
    %589 = vmatpush2.msra.mxu0 0.0
    %590 = vmatprep.subr.mxu0 0.0
    %591 = vmatpush2.msra.mxu0 0.0
    %592 = vmatprep.subr.mxu0 0.0
    %593 = vmatpush2.msra.mxu0 0.0
    %594 = vmatprep.subr.mxu0 0.0
    %595 = vmatpush2.msra.mxu0 0.0
    %596 = vmatprep.subr.mxu0 0.0
    %597 = vmatpush2.msra.mxu0 0.0
    %598 = vmatprep.subr.mxu0 0.0
    %599 = vmatpush2.msra.mxu0 0.0
    %600 = vmatprep.subr.mxu0 0.0
    %601 = vmatpush2.msra.mxu0 0.0
    %602 = vmatprep.mubr.f32.mxu0 0.0
    %603 = vmatmul.mubr.f32.gmra.mxu0 %v536
    %v604 = vpop.f32.mrf.mxu0
    %v605 = vadd.f32 0.0, %v604
    %v606 = vpop.f32.mrf.mxu0
    %607 = vdwg.mxu0
    %608 = vrot.lane.b32.xlu0 %v155, 64
    %v609 = vpop.permute.xlu0 %608
    %v612 = vsel %vm487, %v529, 0
    %614 = vmatprep.subr.mxu0 0.0
    %615 = vmatpush1.msra.mxu0 0.0
    %616 = vmatprep.subr.mxu0 0.0
    %617 = vmatpush1.msra.mxu0 0.0
    %618 = vmatprep.subr.mxu0 0.0
    %619 = vmatpush1.msra.mxu0 0.0
    %620 = vmatprep.subr.mxu0 0.0
    %621 = vmatpush1.msra.mxu0 0.0
    %622 = vmatprep.subr.mxu0 0.0
    %623 = vmatpush1.msra.mxu0 0.0
    %624 = vmatprep.subr.mxu0 0.0
    %625 = vmatpush1.msra.mxu0 0.0
    %626 = vmatprep.subr.mxu0 0.0
    %627 = vmatpush1.msra.mxu0 0.0
    %628 = vmatprep.subr.mxu0 0.0
    %629 = vmatpush1.msra.mxu0 0.0
    %630 = vmatprep.subr.mxu0 0.0
    %631 = vmatpush1.msra.mxu0 0.0
    %632 = vmatprep.subr.mxu0 0.0
    %633 = vmatpush1.msra.mxu0 0.0
    %634 = vmatprep.subr.mxu0 0.0
    %635 = vmatpush1.msra.mxu0 0.0
    %636 = vmatprep.subr.mxu0 0.0
    %637 = vmatpush1.msra.mxu0 0.0
    %638 = vmatprep.subr.mxu0 0.0
    %639 = vmatpush1.msra.mxu0 0.0
    %640 = vmatprep.subr.mxu0 0.0
    %641 = vmatpush1.msra.mxu0 0.0
    %642 = vmatprep.subr.mxu0 0.0
    %643 = vmatpush1.msra.mxu0 0.0
    %644 = vmatprep.subr.mxu0 0.0
    %645 = vmatpush1.msra.mxu0 %v609
    %646 = vmatprep.subr.mxu0 0.0
    %647 = vmatpush2.msra.mxu0 0.0
    %648 = vmatprep.subr.mxu0 0.0
    %649 = vmatpush2.msra.mxu0 0.0
    %650 = vmatprep.subr.mxu0 0.0
    %651 = vmatpush2.msra.mxu0 0.0
    %652 = vmatprep.subr.mxu0 0.0
    %653 = vmatpush2.msra.mxu0 0.0
    %654 = vmatprep.subr.mxu0 0.0
    %655 = vmatpush2.msra.mxu0 0.0
    %656 = vmatprep.subr.mxu0 0.0
    %657 = vmatpush2.msra.mxu0 0.0
    %658 = vmatprep.subr.mxu0 0.0
    %659 = vmatpush2.msra.mxu0 0.0
    %660 = vmatprep.subr.mxu0 0.0
    %661 = vmatpush2.msra.mxu0 0.0
    %662 = vmatprep.subr.mxu0 0.0
    %663 = vmatpush2.msra.mxu0 0.0
    %664 = vmatprep.subr.mxu0 0.0
    %665 = vmatpush2.msra.mxu0 0.0
    %666 = vmatprep.subr.mxu0 0.0
    %667 = vmatpush2.msra.mxu0 0.0
    %668 = vmatprep.subr.mxu0 0.0
    %669 = vmatpush2.msra.mxu0 0.0
    %670 = vmatprep.subr.mxu0 0.0
    %671 = vmatpush2.msra.mxu0 0.0
    %672 = vmatprep.subr.mxu0 0.0
    %673 = vmatpush2.msra.mxu0 0.0
    %674 = vmatprep.subr.mxu0 0.0
    %675 = vmatpush2.msra.mxu0 0.0
    %676 = vmatprep.subr.mxu0 0.0
    %677 = vmatpush2.msra.mxu0 0.0
    %678 = vmatprep.mubr.f32.mxu0 0.0
    %679 = vmatmul.mubr.f32.gmra.mxu0 %v612
    %v680 = vpop.f32.mrf.mxu0
    %v681 = vadd.f32 0.0, %v680
    %v682 = vpop.f32.mrf.mxu0
    %683 = vdwg.mxu0
    %684 = vrot.lane.b32.xlu0 %v161, 64
    %v685 = vpop.permute.xlu0 %684
    %v688 = vsel %vm487, %v530, 0
    %690 = vmatprep.subr.mxu0 0.0
    %691 = vmatpush1.msra.mxu0 0.0
    %692 = vmatprep.subr.mxu0 0.0
    %693 = vmatpush1.msra.mxu0 0.0
    %694 = vmatprep.subr.mxu0 0.0
    %695 = vmatpush1.msra.mxu0 0.0
    %696 = vmatprep.subr.mxu0 0.0
    %697 = vmatpush1.msra.mxu0 0.0
    %698 = vmatprep.subr.mxu0 0.0
    %699 = vmatpush1.msra.mxu0 0.0
    %700 = vmatprep.subr.mxu0 0.0
    %701 = vmatpush1.msra.mxu0 0.0
    %702 = vmatprep.subr.mxu0 0.0
    %703 = vmatpush1.msra.mxu0 0.0
    %704 = vmatprep.subr.mxu0 0.0
    %705 = vmatpush1.msra.mxu0 0.0
    %706 = vmatprep.subr.mxu0 0.0
    %707 = vmatpush1.msra.mxu0 0.0
    %708 = vmatprep.subr.mxu0 0.0
    %709 = vmatpush1.msra.mxu0 0.0
    %710 = vmatprep.subr.mxu0 0.0
    %711 = vmatpush1.msra.mxu0 0.0
    %712 = vmatprep.subr.mxu0 0.0
    %713 = vmatpush1.msra.mxu0 0.0
    %714 = vmatprep.subr.mxu0 0.0
    %715 = vmatpush1.msra.mxu0 0.0
    %716 = vmatprep.subr.mxu0 0.0
    %717 = vmatpush1.msra.mxu0 0.0
    %718 = vmatprep.subr.mxu0 0.0
    %719 = vmatpush1.msra.mxu0 0.0
    %720 = vmatprep.subr.mxu0 0.0
    %721 = vmatpush1.msra.mxu0 %v685
    %722 = vmatprep.subr.mxu0 0.0
    %723 = vmatpush2.msra.mxu0 0.0
    %724 = vmatprep.subr.mxu0 0.0
    %725 = vmatpush2.msra.mxu0 0.0
    %726 = vmatprep.subr.mxu0 0.0
    %727 = vmatpush2.msra.mxu0 0.0
    %728 = vmatprep.subr.mxu0 0.0
    %729 = vmatpush2.msra.mxu0 0.0
    %730 = vmatprep.subr.mxu0 0.0
    %731 = vmatpush2.msra.mxu0 0.0
    %732 = vmatprep.subr.mxu0 0.0
    %733 = vmatpush2.msra.mxu0 0.0
    %734 = vmatprep.subr.mxu0 0.0
    %735 = vmatpush2.msra.mxu0 0.0
    %736 = vmatprep.subr.mxu0 0.0
    %737 = vmatpush2.msra.mxu0 0.0
    %738 = vmatprep.subr.mxu0 0.0
    %739 = vmatpush2.msra.mxu0 0.0
    %740 = vmatprep.subr.mxu0 0.0
    %741 = vmatpush2.msra.mxu0 0.0
    %742 = vmatprep.subr.mxu0 0.0
    %743 = vmatpush2.msra.mxu0 0.0
    %744 = vmatprep.subr.mxu0 0.0
    %745 = vmatpush2.msra.mxu0 0.0
    %746 = vmatprep.subr.mxu0 0.0
    %747 = vmatpush2.msra.mxu0 0.0
    %748 = vmatprep.subr.mxu0 0.0
    %749 = vmatpush2.msra.mxu0 0.0
    %750 = vmatprep.subr.mxu0 0.0
    %751 = vmatpush2.msra.mxu0 0.0
    %752 = vmatprep.subr.mxu0 0.0
    %753 = vmatpush2.msra.mxu0 0.0
    %754 = vmatprep.mubr.f32.mxu0 0.0
    %755 = vmatmul.mubr.f32.gmra.mxu0 %v688
    %v756 = vpop.f32.mrf.mxu0
    %v757 = vadd.f32 0.0, %v756
    %v758 = vpop.f32.mrf.mxu0
    %759 = vdwg.mxu0
    %760 = vrot.lane.b32.xlu0 %v163, 64
    %v761 = vpop.permute.xlu0 %760
    %v764 = vsel %vm487, %v531, 0
    %766 = vmatprep.subr.mxu0 0.0
    %767 = vmatpush1.msra.mxu0 0.0
    %768 = vmatprep.subr.mxu0 0.0
    %769 = vmatpush1.msra.mxu0 0.0
    %770 = vmatprep.subr.mxu0 0.0
    %771 = vmatpush1.msra.mxu0 0.0
    %772 = vmatprep.subr.mxu0 0.0
    %773 = vmatpush1.msra.mxu0 0.0
    %774 = vmatprep.subr.mxu0 0.0
    %775 = vmatpush1.msra.mxu0 0.0
    %776 = vmatprep.subr.mxu0 0.0
    %777 = vmatpush1.msra.mxu0 0.0
    %778 = vmatprep.subr.mxu0 0.0
    %779 = vmatpush1.msra.mxu0 0.0
    %780 = vmatprep.subr.mxu0 0.0
    %781 = vmatpush1.msra.mxu0 0.0
    %782 = vmatprep.subr.mxu0 0.0
    %783 = vmatpush1.msra.mxu0 0.0
    %784 = vmatprep.subr.mxu0 0.0
    %785 = vmatpush1.msra.mxu0 0.0
    %786 = vmatprep.subr.mxu0 0.0
    %787 = vmatpush1.msra.mxu0 0.0
    %788 = vmatprep.subr.mxu0 0.0
    %789 = vmatpush1.msra.mxu0 0.0
    %790 = vmatprep.subr.mxu0 0.0
    %791 = vmatpush1.msra.mxu0 0.0
    %792 = vmatprep.subr.mxu0 0.0
    %793 = vmatpush1.msra.mxu0 0.0
    %794 = vmatprep.subr.mxu0 0.0
    %795 = vmatpush1.msra.mxu0 0.0
    %796 = vmatprep.subr.mxu0 0.0
    %797 = vmatpush1.msra.mxu0 %v761
    %798 = vmatprep.subr.mxu0 0.0
    %799 = vmatpush2.msra.mxu0 0.0
    %800 = vmatprep.subr.mxu0 0.0
    %801 = vmatpush2.msra.mxu0 0.0
    %802 = vmatprep.subr.mxu0 0.0
    %803 = vmatpush2.msra.mxu0 0.0
    %804 = vmatprep.subr.mxu0 0.0
    %805 = vmatpush2.msra.mxu0 0.0
    %806 = vmatprep.subr.mxu0 0.0
    %807 = vmatpush2.msra.mxu0 0.0
    %808 = vmatprep.subr.mxu0 0.0
    %809 = vmatpush2.msra.mxu0 0.0
    %810 = vmatprep.subr.mxu0 0.0
    %811 = vmatpush2.msra.mxu0 0.0
    %812 = vmatprep.subr.mxu0 0.0
    %813 = vmatpush2.msra.mxu0 0.0
    %814 = vmatprep.subr.mxu0 0.0
    %815 = vmatpush2.msra.mxu0 0.0
    %816 = vmatprep.subr.mxu0 0.0
    %817 = vmatpush2.msra.mxu0 0.0
    %818 = vmatprep.subr.mxu0 0.0
    %819 = vmatpush2.msra.mxu0 0.0
    %820 = vmatprep.subr.mxu0 0.0
    %821 = vmatpush2.msra.mxu0 0.0
    %822 = vmatprep.subr.mxu0 0.0
    %823 = vmatpush2.msra.mxu0 0.0
    %824 = vmatprep.subr.mxu0 0.0
    %825 = vmatpush2.msra.mxu0 0.0
    %826 = vmatprep.subr.mxu0 0.0
    %827 = vmatpush2.msra.mxu0 0.0
    %828 = vmatprep.subr.mxu0 0.0
    %829 = vmatpush2.msra.mxu0 0.0
    %830 = vmatprep.mubr.f32.mxu0 0.0
    %831 = vmatmul.mubr.f32.gmra.mxu0 %v764
    %v832 = vpop.f32.mrf.mxu0
    %v833 = vadd.f32 0.0, %v832
    %v834 = vpop.f32.mrf.mxu0
    %835 = vdwg.mxu0
    %838 = vrot.lane.b32.xlu0 %v757, 16
    %v839 = vpop.permute.xlu0 %838
    %840 = vrot.lane.b32.xlu0 %v833, 16
    %v841 = vpop.permute.xlu0 %840
    %v844 = vsel %vm166, %v605, %v839
    %v845 = vsel %vm166, %v681, %v841
    %v846 = vpack.c.bf16 %v845, %v844
    %v847 = vld [vmem:[%s2 + $0x20] sm:$0xf]
    %v848 = vld [vmem:[%s2 + $0x24] sm:$0xf]
    %v849 = vld [vmem:[%s2 + $0x28] sm:$0xf]
    %v850 = vld [vmem:[%s2 + $0x2c] sm:$0xf]
    %v851 = vld [vmem:[%s3 + $0x3] sm:$0x1]
    %v852 = vlaneseq
    %v853 = vshrl.u32 %v852, 7
    %v854 = vsub.s32 0, %v853
    %v855 = vrot.slane %v851, %v854
    %v860 = vunpack.c.l.b16 %v847
    %v861 = vunpack.c.l.b16 %v848
    %v862 = vunpack.c.l.b16 %v849
    %v863 = vunpack.c.l.b16 %v850
    %v864 = vpack.c.b16 %v861, %v860
    %v865 = vpack.c.b16 %v863, %v862
    %v869 = vsel %vm26, %v846, 0
    %871 = vmatprep.subr.bf16.mxu0 0
    %872 = vmatpush1.bf16.msra.mxu0 0
    %873 = vmatprep.subr.bf16.mxu0 0
    %874 = vmatpush1.bf16.msra.mxu0 0
    %875 = vmatprep.subr.bf16.mxu0 0
    %876 = vmatpush1.bf16.msra.mxu0 0
    %877 = vmatprep.subr.bf16.mxu0 0
    %878 = vmatpush1.bf16.msra.mxu0 0
    %879 = vmatprep.subr.bf16.mxu0 0
    %880 = vmatpush1.bf16.msra.mxu0 0
    %881 = vmatprep.subr.bf16.mxu0 0
    %882 = vmatpush1.bf16.msra.mxu0 0
    %883 = vmatprep.subr.bf16.mxu0 0
    %884 = vmatpush1.bf16.msra.mxu0 %v865
    %885 = vmatprep.subr.bf16.mxu0 0
    %886 = vmatpush1.bf16.msra.mxu0 %v864
    %887 = vmatprep.subr.bf16.mxu0 0
    %888 = vmatpush2.bf16.msra.mxu0 0
    %889 = vmatprep.subr.bf16.mxu0 0
    %890 = vmatpush2.bf16.msra.mxu0 0
    %891 = vmatprep.subr.bf16.mxu0 0
    %892 = vmatpush2.bf16.msra.mxu0 0
    %893 = vmatprep.subr.bf16.mxu0 0
    %894 = vmatpush2.bf16.msra.mxu0 0
    %895 = vmatprep.subr.bf16.mxu0 0
    %896 = vmatpush2.bf16.msra.mxu0 0
    %897 = vmatprep.subr.bf16.mxu0 0
    %898 = vmatpush2.bf16.msra.mxu0 0
    %899 = vmatprep.subr.bf16.mxu0 0
    %900 = vmatpush2.bf16.msra.mxu0 0
    %901 = vmatprep.subr.bf16.mxu0 0
    %902 = vmatpush2.bf16.msra.mxu0 0
    %903 = vmatprep.mubr.bf16.mxu0 0
    %904 = vmatmul.mubr.bf16.gmra.mxu0 %v869
    %v905 = vpop.f32.mrf.mxu0
    %v906 = vadd.f32 %v855, %v905
    %v907 = vpop.f32.mrf.mxu0
    %v908 = vpop.f32.mrf.mxu0
    %v909 = vadd.f32 %v855, %v908
    %v910 = vpop.f32.mrf.mxu0
    %911 = vdwg.mxu0
    %v912 = vadd.f32 %v906, %v64
    %v913 = vadd.f32 %v909, %v65
    %v914 = vld [vmem:[%s3 + $0x4] sm:$0x1]
    %v915 = vld [vmem:[%s3 + $0x5] sm:$0x1]
    %v916 = vsel %vm26, %v912, 0.0
    %917 = vadd.xlane.f32.xlu0 %v916
    %v918 = vpop.xlane.xlu0 %917
    %v919 = vsel %vm26, %v913, 0.0
    %920 = vadd.xlane.f32.xlu0 %v919
    %v921 = vpop.xlane.xlu0 %920
    %v922 = vmul.f32 %v918, %v33
    %v923 = vmul.f32 %v921, %v33
    %v924 = vsub.f32 %v912, %v922
    %v925 = vsub.f32 %v913, %v923
    %v926 = vmul.f32 %v924, %v924
    %v927 = vmul.f32 %v925, %v925
    %v928 = vsel %vm26, %v926, 0.0
    %929 = vadd.xlane.f32.xlu0 %v928
    %v930 = vpop.xlane.xlu0 %929
    %v931 = vsel %vm26, %v927, 0.0
    %932 = vadd.xlane.f32.xlu0 %v931
    %v933 = vpop.xlane.xlu0 %932
    %v934 = vmul.f32 %v930, %v33
    %v935 = vmul.f32 %v933, %v33
    %v936 = vadd.f32 %v934, 1e-12
    %v937 = vadd.f32 %v935, 1e-12
    %v938 = vrsqrt.pop %v936
    %v939 = vrsqrt.pop %v937
    %v940 = vmul.f32 %v924, %v938
    %v941 = vmul.f32 %v925, %v939
    %v942 = vlaneseq
    %v943 = vshrl.u32 %v942, 7
    %v944 = vsub.s32 0, %v943
    %v945 = vrot.slane %v914, %v944
    %v946 = vmul.f32 %v940, %v945
    %v947 = vmul.f32 %v941, %v945
    %v948 = vlaneseq
    %v949 = vshrl.u32 %v948, 7
    %v950 = vsub.s32 0, %v949
    %v951 = vrot.slane %v915, %v950
    %v952 = vadd.f32 %v946, %v951
    %v953 = vadd.f32 %v947, %v951
    %v954 = vpack.c.bf16 %v953, %v952
    %v955 = vld [vmem:[%s2 + $0x40] sm:$0xf]
    %v956 = vld [vmem:[%s2 + $0x44] sm:$0xf]
    %v957 = vld [vmem:[%s2 + $0x48] sm:$0xf]
    %v958 = vld [vmem:[%s2 + $0x4c] sm:$0xf]
    %v959 = vld [vmem:[%s3 + $0x6] sm:$0x1]
    %v960 = vlaneseq
    %v961 = vshrl.u32 %v960, 7
    %v962 = vsub.s32 0, %v961
    %v963 = vrot.slane %v959, %v962
    %v968 = vunpack.c.l.b16 %v955
    %v969 = vunpack.c.l.b16 %v956
    %v970 = vunpack.c.l.b16 %v957
    %v971 = vunpack.c.l.b16 %v958
    %v972 = vpack.c.b16 %v969, %v968
    %v973 = vpack.c.b16 %v971, %v970
    %v977 = vsel %vm26, %v954, 0
    %979 = vmatprep.subr.bf16.mxu0 0
    %980 = vmatpush1.bf16.msra.mxu0 0
    %981 = vmatprep.subr.bf16.mxu0 0
    %982 = vmatpush1.bf16.msra.mxu0 0
    %983 = vmatprep.subr.bf16.mxu0 0
    %984 = vmatpush1.bf16.msra.mxu0 0
    %985 = vmatprep.subr.bf16.mxu0 0
    %986 = vmatpush1.bf16.msra.mxu0 0
    %987 = vmatprep.subr.bf16.mxu0 0
    %988 = vmatpush1.bf16.msra.mxu0 0
    %989 = vmatprep.subr.bf16.mxu0 0
    %990 = vmatpush1.bf16.msra.mxu0 0
    %991 = vmatprep.subr.bf16.mxu0 0
    %992 = vmatpush1.bf16.msra.mxu0 %v973
    %993 = vmatprep.subr.bf16.mxu0 0
    %994 = vmatpush1.bf16.msra.mxu0 %v972
    %995 = vmatprep.subr.bf16.mxu0 0
    %996 = vmatpush2.bf16.msra.mxu0 0
    %997 = vmatprep.subr.bf16.mxu0 0
    %998 = vmatpush2.bf16.msra.mxu0 0
    %999 = vmatprep.subr.bf16.mxu0 0
    %1000 = vmatpush2.bf16.msra.mxu0 0
    %1001 = vmatprep.subr.bf16.mxu0 0
    %1002 = vmatpush2.bf16.msra.mxu0 0
    %1003 = vmatprep.subr.bf16.mxu0 0
    %1004 = vmatpush2.bf16.msra.mxu0 0
    %1005 = vmatprep.subr.bf16.mxu0 0
    %1006 = vmatpush2.bf16.msra.mxu0 0
    %1007 = vmatprep.subr.bf16.mxu0 0
    %1008 = vmatpush2.bf16.msra.mxu0 0
    %1009 = vmatprep.subr.bf16.mxu0 0
    %1010 = vmatpush2.bf16.msra.mxu0 0
    %1011 = vmatprep.mubr.bf16.mxu0 0
    %1012 = vmatmul.mubr.bf16.gmra.mxu0 %v977
    %v1013 = vpop.f32.mrf.mxu0
    %v1014 = vadd.f32 %v963, %v1013
    %v1015 = vpop.f32.mrf.mxu0
    %v1016 = vpop.f32.mrf.mxu0
    %v1017 = vadd.f32 %v963, %v1016
    %v1018 = vpop.f32.mrf.mxu0
    %1019 = vdwg.mxu0
    %v1020 = vmul.f32 %v1014, 0.5
    %v1021 = vmul.f32 %v1017, 0.5
    %v1022 = vmul.f32 %v1014, 0.044715
    %v1023 = vmul.f32 %v1017, 0.044715
    %v1024 = vmul.f32 %v1022, %v1014
    %v1025 = vmul.f32 %v1023, %v1017
    %v1026 = vmul.f32 %v1024, %v1014
    %v1027 = vmul.f32 %v1025, %v1017
    %v1028 = vadd.f32 %v1014, %v1026
    %v1029 = vadd.f32 %v1017, %v1027
    %v1030 = vmul.f32 %v1028, 0.7978846
    %v1031 = vmul.f32 %v1029, 0.7978846
    %v1032 = vtanh.pop %v1030
    %v1033 = vtanh.pop %v1031
    %v1034 = vadd.f32 %v1032, 1.0
    %v1035 = vadd.f32 %v1033, 1.0
    %v1036 = vmul.f32 %v1020, %v1034
    %v1037 = vmul.f32 %v1021, %v1035
    %v1038 = vpack.c.bf16 %v1037, %v1036
    %v1039 = vld [vmem:[%s2 + $0x60] sm:$0xf]
    %v1040 = vld [vmem:[%s2 + $0x64] sm:$0xf]
    %v1041 = vld [vmem:[%s2 + $0x68] sm:$0xf]
    %v1042 = vld [vmem:[%s2 + $0x6c] sm:$0xf]
    %v1043 = vld [vmem:[%s2 + $0x70] sm:$0xf]
    %v1044 = vld [vmem:[%s2 + $0x74] sm:$0xf]
    %v1045 = vld [vmem:[%s2 + $0x78] sm:$0xf]
    %v1046 = vld [vmem:[%s2 + $0x7c] sm:$0xf]
    %v1047 = vld [vmem:[%s3 + $0x7] sm:$0x1]
    %v1048 = vlaneseq
    %v1049 = vshrl.u32 %v1048, 7
    %v1050 = vsub.s32 0, %v1049
    %v1051 = vrot.slane %v1047, %v1050
    %v1060 = vunpack.c.l.b16 %v1039
    %v1061 = vunpack.c.l.b16 %v1040
    %v1062 = vunpack.c.l.b16 %v1041
    %v1063 = vunpack.c.l.b16 %v1042
    %v1064 = vunpack.c.l.b16 %v1043
    %v1065 = vunpack.c.l.b16 %v1044
    %v1066 = vunpack.c.l.b16 %v1045
    %v1067 = vunpack.c.l.b16 %v1046
    %v1068 = vpack.c.b16 %v1061, %v1060
    %v1069 = vpack.c.b16 %v1063, %v1062
    %v1070 = vpack.c.b16 %v1065, %v1064
    %v1071 = vpack.c.b16 %v1067, %v1066
    %vm1076 = vcmask 523264
    %v1078 = vsel %vm1076, %v1038, 0
    %1080 = vmatprep.subr.bf16.mxu0 0
    %1081 = vmatpush1.bf16.msra.mxu0 0
    %1082 = vmatprep.subr.bf16.mxu0 0
    %1083 = vmatpush1.bf16.msra.mxu0 0
    %1084 = vmatprep.subr.bf16.mxu0 0
    %1085 = vmatpush1.bf16.msra.mxu0 0
    %1086 = vmatprep.subr.bf16.mxu0 0
    %1087 = vmatpush1.bf16.msra.mxu0 0
    %1088 = vmatprep.subr.bf16.mxu0 0
    %1089 = vmatpush1.bf16.msra.mxu0 %v1071
    %1090 = vmatprep.subr.bf16.mxu0 0
    %1091 = vmatpush1.bf16.msra.mxu0 %v1070
    %1092 = vmatprep.subr.bf16.mxu0 0
    %1093 = vmatpush1.bf16.msra.mxu0 %v1069
    %1094 = vmatprep.subr.bf16.mxu0 0
    %1095 = vmatpush1.bf16.msra.mxu0 %v1068
    %1096 = vmatprep.subr.bf16.mxu0 0
    %1097 = vmatpush2.bf16.msra.mxu0 0
    %1098 = vmatprep.subr.bf16.mxu0 0
    %1099 = vmatpush2.bf16.msra.mxu0 0
    %1100 = vmatprep.subr.bf16.mxu0 0
    %1101 = vmatpush2.bf16.msra.mxu0 0
    %1102 = vmatprep.subr.bf16.mxu0 0
    %1103 = vmatpush2.bf16.msra.mxu0 0
    %1104 = vmatprep.subr.bf16.mxu0 0
    %1105 = vmatpush2.bf16.msra.mxu0 0
    %1106 = vmatprep.subr.bf16.mxu0 0
    %1107 = vmatpush2.bf16.msra.mxu0 0
    %1108 = vmatprep.subr.bf16.mxu0 0
    %1109 = vmatpush2.bf16.msra.mxu0 0
    %1110 = vmatprep.subr.bf16.mxu0 0
    %1111 = vmatpush2.bf16.msra.mxu0 0
    %1112 = vmatprep.mubr.bf16.mxu0 0
    %1113 = vmatmul.mubr.bf16.gmra.mxu0 %v1078
    %v1114 = vpop.f32.mrf.mxu0
    %v1115 = vadd.f32 %v1051, %v1114
    %v1116 = vpop.f32.mrf.mxu0
    %v1117 = vpop.f32.mrf.mxu0
    %v1118 = vadd.f32 %v1051, %v1117
    %v1119 = vpop.f32.mrf.mxu0
    %1120 = vdwg.mxu0
    %v1121 = vadd.f32 %v1115, %v952
    %v1122 = vadd.f32 %v1118, %v953
    %v1123 = vld [vmem:[%s3 + $0x8] sm:$0x1]
    %v1124 = vld [vmem:[%s3 + $0x9] sm:$0x1]
    %v1125 = vsel %vm26, %v1121, 0.0
    %1126 = vadd.xlane.f32.xlu0 %v1125
    %v1127 = vpop.xlane.xlu0 %1126
    %v1128 = vsel %vm26, %v1122, 0.0
    %1129 = vadd.xlane.f32.xlu0 %v1128
    %v1130 = vpop.xlane.xlu0 %1129
    %v1131 = vmul.f32 %v1127, %v33
    %v1132 = vmul.f32 %v1130, %v33
    %v1133 = vsub.f32 %v1121, %v1131
    %v1134 = vsub.f32 %v1122, %v1132
    %v1135 = vmul.f32 %v1133, %v1133
    %v1136 = vmul.f32 %v1134, %v1134
    %v1137 = vsel %vm26, %v1135, 0.0
    %1138 = vadd.xlane.f32.xlu0 %v1137
    %v1139 = vpop.xlane.xlu0 %1138
    %v1140 = vsel %vm26, %v1136, 0.0
    %1141 = vadd.xlane.f32.xlu0 %v1140
    %v1142 = vpop.xlane.xlu0 %1141
    %v1143 = vmul.f32 %v1139, %v33
    %v1144 = vmul.f32 %v1142, %v33
    %v1145 = vadd.f32 %v1143, 1e-12
    %v1146 = vadd.f32 %v1144, 1e-12
    %v1147 = vrsqrt.pop %v1145
    %v1148 = vrsqrt.pop %v1146
    %v1149 = vmul.f32 %v1133, %v1147
    %v1150 = vmul.f32 %v1134, %v1148
    %v1151 = vlaneseq
    %v1152 = vshrl.u32 %v1151, 7
    %v1153 = vsub.s32 0, %v1152
    %v1154 = vrot.slane %v1123, %v1153
    %v1155 = vmul.f32 %v1149, %v1154
    %v1156 = vmul.f32 %v1150, %v1154
    %v1157 = vlaneseq
    %v1158 = vshrl.u32 %v1157, 7
    %v1159 = vsub.s32 0, %v1158
    %v1160 = vrot.slane %v1124, %v1159
    %v1161 = vadd.f32 %v1155, %v1160
    %v1162 = vadd.f32 %v1156, %v1160
    %v1163 = vpack.c.bf16 %v1162, %v1161
    %v1164 = vld [vmem:[%s2 + $0x10] sm:$0xf]
    %v1165 = vld [vmem:[%s2 + $0x14] sm:$0xf]
    %v1166 = vld [vmem:[%s2 + $0x18] sm:$0xf]
    %v1167 = vld [vmem:[%s2 + $0x1c] sm:$0xf]
    %v1168 = vld [vmem:[%s3 + $0xa] sm:$0x1]
    %v1169 = vlaneseq
    %v1170 = vshrl.u32 %v1169, 7
    %v1171 = vsub.s32 0, %v1170
    %v1172 = vrot.slane %v1168, %v1171
    %v1177 = vunpack.c.l.b16 %v1164
    %v1178 = vunpack.c.l.b16 %v1165
    %v1179 = vunpack.c.l.b16 %v1166
    %v1180 = vunpack.c.l.b16 %v1167
    %v1181 = vpack.c.b16 %v1178, %v1177
    %v1182 = vpack.c.b16 %v1180, %v1179
    %v1186 = vsel %vm26, %v1163, 0
    %1188 = vmatprep.subr.bf16.mxu0 0
    %1189 = vmatpush1.bf16.msra.mxu0 0
    %1190 = vmatprep.subr.bf16.mxu0 0
    %1191 = vmatpush1.bf16.msra.mxu0 0
    %1192 = vmatprep.subr.bf16.mxu0 0
    %1193 = vmatpush1.bf16.msra.mxu0 0
    %1194 = vmatprep.subr.bf16.mxu0 0
    %1195 = vmatpush1.bf16.msra.mxu0 0
    %1196 = vmatprep.subr.bf16.mxu0 0
    %1197 = vmatpush1.bf16.msra.mxu0 0
    %1198 = vmatprep.subr.bf16.mxu0 0
    %1199 = vmatpush1.bf16.msra.mxu0 0
    %1200 = vmatprep.subr.bf16.mxu0 0
    %1201 = vmatpush1.bf16.msra.mxu0 %v1182
    %1202 = vmatprep.subr.bf16.mxu0 0
    %1203 = vmatpush1.bf16.msra.mxu0 %v1181
    %1204 = vmatprep.subr.bf16.mxu0 0
    %1205 = vmatpush2.bf16.msra.mxu0 0
    %1206 = vmatprep.subr.bf16.mxu0 0
    %1207 = vmatpush2.bf16.msra.mxu0 0
    %1208 = vmatprep.subr.bf16.mxu0 0
    %1209 = vmatpush2.bf16.msra.mxu0 0
    %1210 = vmatprep.subr.bf16.mxu0 0
    %1211 = vmatpush2.bf16.msra.mxu0 0
    %1212 = vmatprep.subr.bf16.mxu0 0
    %1213 = vmatpush2.bf16.msra.mxu0 0
    %1214 = vmatprep.subr.bf16.mxu0 0
    %1215 = vmatpush2.bf16.msra.mxu0 0
    %1216 = vmatprep.subr.bf16.mxu0 0
    %1217 = vmatpush2.bf16.msra.mxu0 0
    %1218 = vmatprep.subr.bf16.mxu0 0
    %1219 = vmatpush2.bf16.msra.mxu0 0
    %1220 = vmatprep.mubr.bf16.mxu0 0
    %1221 = vmatmul.mubr.bf16.gmra.mxu0 %v1186
    %v1222 = vpop.f32.mrf.mxu0
    %v1223 = vadd.f32 %v1172, %v1222
    %v1224 = vpop.f32.mrf.mxu0
    %v1225 = vpop.f32.mrf.mxu0
    %v1226 = vadd.f32 %v1172, %v1225
    %v1227 = vpop.f32.mrf.mxu0
    %1228 = vdwg.mxu0
    %1231 = vrot.lane.b32.xlu0 %v1223, 112
    %v1232 = vpop.permute.xlu0 %1231
    %1233 = vrot.lane.b32.xlu0 %v1226, 112
    %v1234 = vpop.permute.xlu0 %1233
    %1235 = vrot.lane.b32.xlu0 %v1223, 96
    %v1236 = vpop.permute.xlu0 %1235
    %v1237 = vsel %vm166, %v1223, 0
    %v1239 = vsel %vm166, %v1236, 0
    %1241 = vmatprep.subr.mxu0 0.0
    %1242 = vmatpush1.xpose.msra.mxu0 0.0
    %1243 = vmatprep.subr.mxu0 0.0
    %1244 = vmatpush1.xpose.msra.mxu0 0.0
    %1245 = vmatprep.subr.mxu0 0.0
    %1246 = vmatpush1.xpose.msra.mxu0 0.0
    %1247 = vmatprep.subr.mxu0 0.0
    %1248 = vmatpush1.xpose.msra.mxu0 0.0
    %1249 = vmatprep.subr.mxu0 0.0
    %1250 = vmatpush1.xpose.msra.mxu0 0.0
    %1251 = vmatprep.subr.mxu0 0.0
    %1252 = vmatpush1.xpose.msra.mxu0 0.0
    %1253 = vmatprep.subr.mxu0 0.0
    %1254 = vmatpush1.xpose.msra.mxu0 0.0
    %1255 = vmatprep.subr.mxu0 0.0
    %1256 = vmatpush1.xpose.msra.mxu0 0.0
    %1257 = vmatprep.subr.mxu0 0.0
    %1258 = vmatpush1.xpose.msra.mxu0 0.0
    %1259 = vmatprep.subr.mxu0 0.0
    %1260 = vmatpush1.xpose.msra.mxu0 0.0
    %1261 = vmatprep.subr.mxu0 0.0
    %1262 = vmatpush1.xpose.msra.mxu0 0.0
    %1263 = vmatprep.subr.mxu0 0.0
    %1264 = vmatpush1.xpose.msra.mxu0 0.0
    %1265 = vmatprep.subr.mxu0 0.0
    %1266 = vmatpush1.xpose.msra.mxu0 0.0
    %1267 = vmatprep.subr.mxu0 0.0
    %1268 = vmatpush1.xpose.msra.mxu0 0.0
    %1269 = vmatprep.subr.mxu0 0.0
    %1270 = vmatpush1.xpose.msra.mxu0 0.0
    %1271 = vmatprep.subr.mxu0 0.0
    %1272 = vmatpush1.xpose.msra.mxu0 %v1239
    %1273 = vmatprep.subr.mxu0 0.0
    %1274 = vmatpush2.xpose.msra.mxu0 0.0
    %1275 = vmatprep.subr.mxu0 0.0
    %1276 = vmatpush2.xpose.msra.mxu0 0.0
    %1277 = vmatprep.subr.mxu0 0.0
    %1278 = vmatpush2.xpose.msra.mxu0 0.0
    %1279 = vmatprep.subr.mxu0 0.0
    %1280 = vmatpush2.xpose.msra.mxu0 0.0
    %1281 = vmatprep.subr.mxu0 0.0
    %1282 = vmatpush2.xpose.msra.mxu0 0.0
    %1283 = vmatprep.subr.mxu0 0.0
    %1284 = vmatpush2.xpose.msra.mxu0 0.0
    %1285 = vmatprep.subr.mxu0 0.0
    %1286 = vmatpush2.xpose.msra.mxu0 0.0
    %1287 = vmatprep.subr.mxu0 0.0
    %1288 = vmatpush2.xpose.msra.mxu0 0.0
    %1289 = vmatprep.subr.mxu0 0.0
    %1290 = vmatpush2.xpose.msra.mxu0 0.0
    %1291 = vmatprep.subr.mxu0 0.0
    %1292 = vmatpush2.xpose.msra.mxu0 0.0
    %1293 = vmatprep.subr.mxu0 0.0
    %1294 = vmatpush2.xpose.msra.mxu0 0.0
    %1295 = vmatprep.subr.mxu0 0.0
    %1296 = vmatpush2.xpose.msra.mxu0 0.0
    %1297 = vmatprep.subr.mxu0 0.0
    %1298 = vmatpush2.xpose.msra.mxu0 0.0
    %1299 = vmatprep.subr.mxu0 0.0
    %1300 = vmatpush2.xpose.msra.mxu0 0.0
    %1301 = vmatprep.subr.mxu0 0.0
    %1302 = vmatpush2.xpose.msra.mxu0 0.0
    %1303 = vmatprep.subr.mxu0 0.0
    %1304 = vmatpush2.xpose.msra.mxu0 0.0
    %1305 = vmatprep.mubr.f32.mxu0 0.0
    %1306 = vmatmul.mubr.f32.gmra.mxu0 %v1237
    %v1307 = vpop.f32.mrf.mxu0
    %v1308 = vadd.f32 0.0, %v1307
    %v1309 = vpop.f32.mrf.mxu0
    %1310 = vdwg.mxu0
    %1311 = vrot.lane.b32.xlu0 %v1226, 96
    %v1312 = vpop.permute.xlu0 %1311
    %v1313 = vsel %vm166, %v1226, 0
    %v1315 = vsel %vm166, %v1312, 0
    %1317 = vmatprep.subr.mxu0 0.0
    %1318 = vmatpush1.xpose.msra.mxu0 0.0
    %1319 = vmatprep.subr.mxu0 0.0
    %1320 = vmatpush1.xpose.msra.mxu0 0.0
    %1321 = vmatprep.subr.mxu0 0.0
    %1322 = vmatpush1.xpose.msra.mxu0 0.0
    %1323 = vmatprep.subr.mxu0 0.0
    %1324 = vmatpush1.xpose.msra.mxu0 0.0
    %1325 = vmatprep.subr.mxu0 0.0
    %1326 = vmatpush1.xpose.msra.mxu0 0.0
    %1327 = vmatprep.subr.mxu0 0.0
    %1328 = vmatpush1.xpose.msra.mxu0 0.0
    %1329 = vmatprep.subr.mxu0 0.0
    %1330 = vmatpush1.xpose.msra.mxu0 0.0
    %1331 = vmatprep.subr.mxu0 0.0
    %1332 = vmatpush1.xpose.msra.mxu0 0.0
    %1333 = vmatprep.subr.mxu0 0.0
    %1334 = vmatpush1.xpose.msra.mxu0 0.0
    %1335 = vmatprep.subr.mxu0 0.0
    %1336 = vmatpush1.xpose.msra.mxu0 0.0
    %1337 = vmatprep.subr.mxu0 0.0
    %1338 = vmatpush1.xpose.msra.mxu0 0.0
    %1339 = vmatprep.subr.mxu0 0.0
    %1340 = vmatpush1.xpose.msra.mxu0 0.0
    %1341 = vmatprep.subr.mxu0 0.0
    %1342 = vmatpush1.xpose.msra.mxu0 0.0
    %1343 = vmatprep.subr.mxu0 0.0
    %1344 = vmatpush1.xpose.msra.mxu0 0.0
    %1345 = vmatprep.subr.mxu0 0.0
    %1346 = vmatpush1.xpose.msra.mxu0 0.0
    %1347 = vmatprep.subr.mxu0 0.0
    %1348 = vmatpush1.xpose.msra.mxu0 %v1315
    %1349 = vmatprep.subr.mxu0 0.0
    %1350 = vmatpush2.xpose.msra.mxu0 0.0
    %1351 = vmatprep.subr.mxu0 0.0
    %1352 = vmatpush2.xpose.msra.mxu0 0.0
    %1353 = vmatprep.subr.mxu0 0.0
    %1354 = vmatpush2.xpose.msra.mxu0 0.0
    %1355 = vmatprep.subr.mxu0 0.0
    %1356 = vmatpush2.xpose.msra.mxu0 0.0
    %1357 = vmatprep.subr.mxu0 0.0
    %1358 = vmatpush2.xpose.msra.mxu0 0.0
    %1359 = vmatprep.subr.mxu0 0.0
    %1360 = vmatpush2.xpose.msra.mxu0 0.0
    %1361 = vmatprep.subr.mxu0 0.0
    %1362 = vmatpush2.xpose.msra.mxu0 0.0
    %1363 = vmatprep.subr.mxu0 0.0
    %1364 = vmatpush2.xpose.msra.mxu0 0.0
    %1365 = vmatprep.subr.mxu0 0.0
    %1366 = vmatpush2.xpose.msra.mxu0 0.0
    %1367 = vmatprep.subr.mxu0 0.0
    %1368 = vmatpush2.xpose.msra.mxu0 0.0
    %1369 = vmatprep.subr.mxu0 0.0
    %1370 = vmatpush2.xpose.msra.mxu0 0.0
    %1371 = vmatprep.subr.mxu0 0.0
    %1372 = vmatpush2.xpose.msra.mxu0 0.0
    %1373 = vmatprep.subr.mxu0 0.0
    %1374 = vmatpush2.xpose.msra.mxu0 0.0
    %1375 = vmatprep.subr.mxu0 0.0
    %1376 = vmatpush2.xpose.msra.mxu0 0.0
    %1377 = vmatprep.subr.mxu0 0.0
    %1378 = vmatpush2.xpose.msra.mxu0 0.0
    %1379 = vmatprep.subr.mxu0 0.0
    %1380 = vmatpush2.xpose.msra.mxu0 0.0
    %1381 = vmatprep.mubr.f32.mxu0 0.0
    %1382 = vmatmul.mubr.f32.gmra.mxu0 %v1313
    %v1383 = vpop.f32.mrf.mxu0
    %v1384 = vadd.f32 0.0, %v1383
    %v1385 = vpop.f32.mrf.mxu0
    %1386 = vdwg.mxu0
    %1387 = vrot.lane.b32.xlu0 %v1232, 96
    %v1388 = vpop.permute.xlu0 %1387
    %v1389 = vsel %vm166, %v1232, 0
    %v1391 = vsel %vm166, %v1388, 0
    %1393 = vmatprep.subr.mxu0 0.0
    %1394 = vmatpush1.xpose.msra.mxu0 0.0
    %1395 = vmatprep.subr.mxu0 0.0
    %1396 = vmatpush1.xpose.msra.mxu0 0.0
    %1397 = vmatprep.subr.mxu0 0.0
    %1398 = vmatpush1.xpose.msra.mxu0 0.0
    %1399 = vmatprep.subr.mxu0 0.0
    %1400 = vmatpush1.xpose.msra.mxu0 0.0
    %1401 = vmatprep.subr.mxu0 0.0
    %1402 = vmatpush1.xpose.msra.mxu0 0.0
    %1403 = vmatprep.subr.mxu0 0.0
    %1404 = vmatpush1.xpose.msra.mxu0 0.0
    %1405 = vmatprep.subr.mxu0 0.0
    %1406 = vmatpush1.xpose.msra.mxu0 0.0
    %1407 = vmatprep.subr.mxu0 0.0
    %1408 = vmatpush1.xpose.msra.mxu0 0.0
    %1409 = vmatprep.subr.mxu0 0.0
    %1410 = vmatpush1.xpose.msra.mxu0 0.0
    %1411 = vmatprep.subr.mxu0 0.0
    %1412 = vmatpush1.xpose.msra.mxu0 0.0
    %1413 = vmatprep.subr.mxu0 0.0
    %1414 = vmatpush1.xpose.msra.mxu0 0.0
    %1415 = vmatprep.subr.mxu0 0.0
    %1416 = vmatpush1.xpose.msra.mxu0 0.0
    %1417 = vmatprep.subr.mxu0 0.0
    %1418 = vmatpush1.xpose.msra.mxu0 0.0
    %1419 = vmatprep.subr.mxu0 0.0
    %1420 = vmatpush1.xpose.msra.mxu0 0.0
    %1421 = vmatprep.subr.mxu0 0.0
    %1422 = vmatpush1.xpose.msra.mxu0 0.0
    %1423 = vmatprep.subr.mxu0 0.0
    %1424 = vmatpush1.xpose.msra.mxu0 %v1391
    %1425 = vmatprep.subr.mxu0 0.0
    %1426 = vmatpush2.xpose.msra.mxu0 0.0
    %1427 = vmatprep.subr.mxu0 0.0
    %1428 = vmatpush2.xpose.msra.mxu0 0.0
    %1429 = vmatprep.subr.mxu0 0.0
    %1430 = vmatpush2.xpose.msra.mxu0 0.0
    %1431 = vmatprep.subr.mxu0 0.0
    %1432 = vmatpush2.xpose.msra.mxu0 0.0
    %1433 = vmatprep.subr.mxu0 0.0
    %1434 = vmatpush2.xpose.msra.mxu0 0.0
    %1435 = vmatprep.subr.mxu0 0.0
    %1436 = vmatpush2.xpose.msra.mxu0 0.0
    %1437 = vmatprep.subr.mxu0 0.0
    %1438 = vmatpush2.xpose.msra.mxu0 0.0
    %1439 = vmatprep.subr.mxu0 0.0
    %1440 = vmatpush2.xpose.msra.mxu0 0.0
    %1441 = vmatprep.subr.mxu0 0.0
    %1442 = vmatpush2.xpose.msra.mxu0 0.0
    %1443 = vmatprep.subr.mxu0 0.0
    %1444 = vmatpush2.xpose.msra.mxu0 0.0
    %1445 = vmatprep.subr.mxu0 0.0
    %1446 = vmatpush2.xpose.msra.mxu0 0.0
    %1447 = vmatprep.subr.mxu0 0.0
    %1448 = vmatpush2.xpose.msra.mxu0 0.0
    %1449 = vmatprep.subr.mxu0 0.0
    %1450 = vmatpush2.xpose.msra.mxu0 0.0
    %1451 = vmatprep.subr.mxu0 0.0
    %1452 = vmatpush2.xpose.msra.mxu0 0.0
    %1453 = vmatprep.subr.mxu0 0.0
    %1454 = vmatpush2.xpose.msra.mxu0 0.0
    %1455 = vmatprep.subr.mxu0 0.0
    %1456 = vmatpush2.xpose.msra.mxu0 0.0
    %1457 = vmatprep.mubr.f32.mxu0 0.0
    %1458 = vmatmul.mubr.f32.gmra.mxu0 %v1389
    %v1459 = vpop.f32.mrf.mxu0
    %v1460 = vadd.f32 0.0, %v1459
    %v1461 = vpop.f32.mrf.mxu0
    %1462 = vdwg.mxu0
    %1463 = vrot.lane.b32.xlu0 %v1234, 96
    %v1464 = vpop.permute.xlu0 %1463
    %v1465 = vsel %vm166, %v1234, 0
    %v1467 = vsel %vm166, %v1464, 0
    %1469 = vmatprep.subr.mxu0 0.0
    %1470 = vmatpush1.xpose.msra.mxu0 0.0
    %1471 = vmatprep.subr.mxu0 0.0
    %1472 = vmatpush1.xpose.msra.mxu0 0.0
    %1473 = vmatprep.subr.mxu0 0.0
    %1474 = vmatpush1.xpose.msra.mxu0 0.0
    %1475 = vmatprep.subr.mxu0 0.0
    %1476 = vmatpush1.xpose.msra.mxu0 0.0
    %1477 = vmatprep.subr.mxu0 0.0
    %1478 = vmatpush1.xpose.msra.mxu0 0.0
    %1479 = vmatprep.subr.mxu0 0.0
    %1480 = vmatpush1.xpose.msra.mxu0 0.0
    %1481 = vmatprep.subr.mxu0 0.0
    %1482 = vmatpush1.xpose.msra.mxu0 0.0
    %1483 = vmatprep.subr.mxu0 0.0
    %1484 = vmatpush1.xpose.msra.mxu0 0.0
    %1485 = vmatprep.subr.mxu0 0.0
    %1486 = vmatpush1.xpose.msra.mxu0 0.0
    %1487 = vmatprep.subr.mxu0 0.0
    %1488 = vmatpush1.xpose.msra.mxu0 0.0
    %1489 = vmatprep.subr.mxu0 0.0
    %1490 = vmatpush1.xpose.msra.mxu0 0.0
    %1491 = vmatprep.subr.mxu0 0.0
    %1492 = vmatpush1.xpose.msra.mxu0 0.0
    %1493 = vmatprep.subr.mxu0 0.0
    %1494 = vmatpush1.xpose.msra.mxu0 0.0
    %1495 = vmatprep.subr.mxu0 0.0
    %1496 = vmatpush1.xpose.msra.mxu0 0.0
    %1497 = vmatprep.subr.mxu0 0.0
    %1498 = vmatpush1.xpose.msra.mxu0 0.0
    %1499 = vmatprep.subr.mxu0 0.0
    %1500 = vmatpush1.xpose.msra.mxu0 %v1467
    %1501 = vmatprep.subr.mxu0 0.0
    %1502 = vmatpush2.xpose.msra.mxu0 0.0
    %1503 = vmatprep.subr.mxu0 0.0
    %1504 = vmatpush2.xpose.msra.mxu0 0.0
    %1505 = vmatprep.subr.mxu0 0.0
    %1506 = vmatpush2.xpose.msra.mxu0 0.0
    %1507 = vmatprep.subr.mxu0 0.0
    %1508 = vmatpush2.xpose.msra.mxu0 0.0
    %1509 = vmatprep.subr.mxu0 0.0
    %1510 = vmatpush2.xpose.msra.mxu0 0.0
    %1511 = vmatprep.subr.mxu0 0.0
    %1512 = vmatpush2.xpose.msra.mxu0 0.0
    %1513 = vmatprep.subr.mxu0 0.0
    %1514 = vmatpush2.xpose.msra.mxu0 0.0
    %1515 = vmatprep.subr.mxu0 0.0
    %1516 = vmatpush2.xpose.msra.mxu0 0.0
    %1517 = vmatprep.subr.mxu0 0.0
    %1518 = vmatpush2.xpose.msra.mxu0 0.0
    %1519 = vmatprep.subr.mxu0 0.0
    %1520 = vmatpush2.xpose.msra.mxu0 0.0
    %1521 = vmatprep.subr.mxu0 0.0
    %1522 = vmatpush2.xpose.msra.mxu0 0.0
    %1523 = vmatprep.subr.mxu0 0.0
    %1524 = vmatpush2.xpose.msra.mxu0 0.0
    %1525 = vmatprep.subr.mxu0 0.0
    %1526 = vmatpush2.xpose.msra.mxu0 0.0
    %1527 = vmatprep.subr.mxu0 0.0
    %1528 = vmatpush2.xpose.msra.mxu0 0.0
    %1529 = vmatprep.subr.mxu0 0.0
    %1530 = vmatpush2.xpose.msra.mxu0 0.0
    %1531 = vmatprep.subr.mxu0 0.0
    %1532 = vmatpush2.xpose.msra.mxu0 0.0
    %1533 = vmatprep.mubr.f32.mxu0 0.0
    %1534 = vmatmul.mubr.f32.gmra.mxu0 %v1465
    %v1535 = vpop.f32.mrf.mxu0
    %v1536 = vadd.f32 0.0, %v1535
    %v1537 = vpop.f32.mrf.mxu0
    %1538 = vdwg.mxu0
    %v1539 = vmul.f32 %v1308, 0.25
    %v1540 = vmul.f32 %v1384, 0.25
    %v1541 = vmul.f32 %v1460, 0.25
    %v1542 = vmul.f32 %v1536, 0.25
    %v1543 = vadd.f32 %v1539, %v476
    %v1544 = vadd.f32 %v1540, %v480
    %v1545 = vadd.f32 %v1541, %v476
    %v1546 = vadd.f32 %v1542, %v480
    %v1547 = vsel %vm487, %v1543, -inf
    %1548 = vmax.xlane.f32.xlu0 %v1547
    %v1549 = vpop.xlane.xlu0 %1548
    %v1550 = vsel %vm487, %v1544, -inf
    %1551 = vmax.xlane.f32.xlu0 %v1550
    %v1552 = vpop.xlane.xlu0 %1551
    %v1553 = vsel %vm487, %v1545, -inf
    %1554 = vmax.xlane.f32.xlu0 %v1553
    %v1555 = vpop.xlane.xlu0 %1554
    %v1556 = vsel %vm487, %v1546, -inf
    %1557 = vmax.xlane.f32.xlu0 %v1556
    %v1558 = vpop.xlane.xlu0 %1557
    %v1559 = vsub.f32 %v1543, %v1549
    %v1560 = vsub.f32 %v1544, %v1552
    %v1561 = vsub.f32 %v1545, %v1555
    %v1562 = vsub.f32 %v1546, %v1558
    %v1563 = vmul.f32 %v1559, 1.442695
    %v1564 = vpow.pop %v1563
    %v1565 = vmul.f32 %v1560, 1.442695
    %v1566 = vpow.pop %v1565
    %v1567 = vmul.f32 %v1561, 1.442695
    %v1568 = vpow.pop %v1567
    %v1569 = vmul.f32 %v1562, 1.442695
    %v1570 = vpow.pop %v1569
    %v1571 = vsel %vm487, %v1564, 0.0
    %1572 = vadd.xlane.f32.xlu0 %v1571
    %v1573 = vpop.xlane.xlu0 %1572
    %v1574 = vsel %vm487, %v1566, 0.0
    %1575 = vadd.xlane.f32.xlu0 %v1574
    %v1576 = vpop.xlane.xlu0 %1575
    %v1577 = vsel %vm487, %v1568, 0.0
    %1578 = vadd.xlane.f32.xlu0 %v1577
    %v1579 = vpop.xlane.xlu0 %1578
    %v1580 = vsel %vm487, %v1570, 0.0
    %1581 = vadd.xlane.f32.xlu0 %v1580
    %v1582 = vpop.xlane.xlu0 %1581
    %v1583 = vrcp.pop %v1573
    %v1584 = vrcp.pop %v1576
    %v1585 = vrcp.pop %v1579
    %v1586 = vrcp.pop %v1582
    %v1587 = vmul.f32 %v1564, %v1583
    %v1588 = vmul.f32 %v1566, %v1584
    %v1589 = vmul.f32 %v1568, %v1585
    %v1590 = vmul.f32 %v1570, %v1586
    %1591 = vrot.lane.b32.xlu0 %v1223, 64
    %v1592 = vpop.permute.xlu0 %1591
    %v1595 = vsel %vm487, %v1587, 0
    %1597 = vmatprep.subr.mxu0 0.0
    %1598 = vmatpush1.msra.mxu0 0.0
    %1599 = vmatprep.subr.mxu0 0.0
    %1600 = vmatpush1.msra.mxu0 0.0
    %1601 = vmatprep.subr.mxu0 0.0
    %1602 = vmatpush1.msra.mxu0 0.0
    %1603 = vmatprep.subr.mxu0 0.0
    %1604 = vmatpush1.msra.mxu0 0.0
    %1605 = vmatprep.subr.mxu0 0.0
    %1606 = vmatpush1.msra.mxu0 0.0
    %1607 = vmatprep.subr.mxu0 0.0
    %1608 = vmatpush1.msra.mxu0 0.0
    %1609 = vmatprep.subr.mxu0 0.0
    %1610 = vmatpush1.msra.mxu0 0.0
    %1611 = vmatprep.subr.mxu0 0.0
    %1612 = vmatpush1.msra.mxu0 0.0
    %1613 = vmatprep.subr.mxu0 0.0
    %1614 = vmatpush1.msra.mxu0 0.0
    %1615 = vmatprep.subr.mxu0 0.0
    %1616 = vmatpush1.msra.mxu0 0.0
    %1617 = vmatprep.subr.mxu0 0.0
    %1618 = vmatpush1.msra.mxu0 0.0
    %1619 = vmatprep.subr.mxu0 0.0
    %1620 = vmatpush1.msra.mxu0 0.0
    %1621 = vmatprep.subr.mxu0 0.0
    %1622 = vmatpush1.msra.mxu0 0.0
    %1623 = vmatprep.subr.mxu0 0.0
    %1624 = vmatpush1.msra.mxu0 0.0
    %1625 = vmatprep.subr.mxu0 0.0
    %1626 = vmatpush1.msra.mxu0 0.0
    %1627 = vmatprep.subr.mxu0 0.0
    %1628 = vmatpush1.msra.mxu0 %v1592
    %1629 = vmatprep.subr.mxu0 0.0
    %1630 = vmatpush2.msra.mxu0 0.0
    %1631 = vmatprep.subr.mxu0 0.0
    %1632 = vmatpush2.msra.mxu0 0.0
    %1633 = vmatprep.subr.mxu0 0.0
    %1634 = vmatpush2.msra.mxu0 0.0
    %1635 = vmatprep.subr.mxu0 0.0
    %1636 = vmatpush2.msra.mxu0 0.0
    %1637 = vmatprep.subr.mxu0 0.0
    %1638 = vmatpush2.msra.mxu0 0.0
    %1639 = vmatprep.subr.mxu0 0.0
    %1640 = vmatpush2.msra.mxu0 0.0
    %1641 = vmatprep.subr.mxu0 0.0
    %1642 = vmatpush2.msra.mxu0 0.0
    %1643 = vmatprep.subr.mxu0 0.0
    %1644 = vmatpush2.msra.mxu0 0.0
    %1645 = vmatprep.subr.mxu0 0.0
    %1646 = vmatpush2.msra.mxu0 0.0
    %1647 = vmatprep.subr.mxu0 0.0
    %1648 = vmatpush2.msra.mxu0 0.0
    %1649 = vmatprep.subr.mxu0 0.0
    %1650 = vmatpush2.msra.mxu0 0.0
    %1651 = vmatprep.subr.mxu0 0.0
    %1652 = vmatpush2.msra.mxu0 0.0
    %1653 = vmatprep.subr.mxu0 0.0
    %1654 = vmatpush2.msra.mxu0 0.0
    %1655 = vmatprep.subr.mxu0 0.0
    %1656 = vmatpush2.msra.mxu0 0.0
    %1657 = vmatprep.subr.mxu0 0.0
    %1658 = vmatpush2.msra.mxu0 0.0
    %1659 = vmatprep.subr.mxu0 0.0
    %1660 = vmatpush2.msra.mxu0 0.0
    %1661 = vmatprep.mubr.f32.mxu0 0.0
    %1662 = vmatmul.mubr.f32.gmra.mxu0 %v1595
    %v1663 = vpop.f32.mrf.mxu0
    %v1664 = vadd.f32 0.0, %v1663
    %v1665 = vpop.f32.mrf.mxu0
    %1666 = vdwg.mxu0
    %1667 = vrot.lane.b32.xlu0 %v1226, 64
    %v1668 = vpop.permute.xlu0 %1667
    %v1671 = vsel %vm487, %v1588, 0
    %1673 = vmatprep.subr.mxu0 0.0
    %1674 = vmatpush1.msra.mxu0 0.0
    %1675 = vmatprep.subr.mxu0 0.0
    %1676 = vmatpush1.msra.mxu0 0.0
    %1677 = vmatprep.subr.mxu0 0.0
    %1678 = vmatpush1.msra.mxu0 0.0
    %1679 = vmatprep.subr.mxu0 0.0
    %1680 = vmatpush1.msra.mxu0 0.0
    %1681 = vmatprep.subr.mxu0 0.0
    %1682 = vmatpush1.msra.mxu0 0.0
    %1683 = vmatprep.subr.mxu0 0.0
    %1684 = vmatpush1.msra.mxu0 0.0
    %1685 = vmatprep.subr.mxu0 0.0
    %1686 = vmatpush1.msra.mxu0 0.0
    %1687 = vmatprep.subr.mxu0 0.0
    %1688 = vmatpush1.msra.mxu0 0.0
    %1689 = vmatprep.subr.mxu0 0.0
    %1690 = vmatpush1.msra.mxu0 0.0
    %1691 = vmatprep.subr.mxu0 0.0
    %1692 = vmatpush1.msra.mxu0 0.0
    %1693 = vmatprep.subr.mxu0 0.0
    %1694 = vmatpush1.msra.mxu0 0.0
    %1695 = vmatprep.subr.mxu0 0.0
    %1696 = vmatpush1.msra.mxu0 0.0
    %1697 = vmatprep.subr.mxu0 0.0
    %1698 = vmatpush1.msra.mxu0 0.0
    %1699 = vmatprep.subr.mxu0 0.0
    %1700 = vmatpush1.msra.mxu0 0.0
    %1701 = vmatprep.subr.mxu0 0.0
    %1702 = vmatpush1.msra.mxu0 0.0
    %1703 = vmatprep.subr.mxu0 0.0
    %1704 = vmatpush1.msra.mxu0 %v1668
    %1705 = vmatprep.subr.mxu0 0.0
    %1706 = vmatpush2.msra.mxu0 0.0
    %1707 = vmatprep.subr.mxu0 0.0
    %1708 = vmatpush2.msra.mxu0 0.0
    %1709 = vmatprep.subr.mxu0 0.0
    %1710 = vmatpush2.msra.mxu0 0.0
    %1711 = vmatprep.subr.mxu0 0.0
    %1712 = vmatpush2.msra.mxu0 0.0
    %1713 = vmatprep.subr.mxu0 0.0
    %1714 = vmatpush2.msra.mxu0 0.0
    %1715 = vmatprep.subr.mxu0 0.0
    %1716 = vmatpush2.msra.mxu0 0.0
    %1717 = vmatprep.subr.mxu0 0.0
    %1718 = vmatpush2.msra.mxu0 0.0
    %1719 = vmatprep.subr.mxu0 0.0
    %1720 = vmatpush2.msra.mxu0 0.0
    %1721 = vmatprep.subr.mxu0 0.0
    %1722 = vmatpush2.msra.mxu0 0.0
    %1723 = vmatprep.subr.mxu0 0.0
    %1724 = vmatpush2.msra.mxu0 0.0
    %1725 = vmatprep.subr.mxu0 0.0
    %1726 = vmatpush2.msra.mxu0 0.0
    %1727 = vmatprep.subr.mxu0 0.0
    %1728 = vmatpush2.msra.mxu0 0.0
    %1729 = vmatprep.subr.mxu0 0.0
    %1730 = vmatpush2.msra.mxu0 0.0
    %1731 = vmatprep.subr.mxu0 0.0
    %1732 = vmatpush2.msra.mxu0 0.0
    %1733 = vmatprep.subr.mxu0 0.0
    %1734 = vmatpush2.msra.mxu0 0.0
    %1735 = vmatprep.subr.mxu0 0.0
    %1736 = vmatpush2.msra.mxu0 0.0
    %1737 = vmatprep.mubr.f32.mxu0 0.0
    %1738 = vmatmul.mubr.f32.gmra.mxu0 %v1671
    %v1739 = vpop.f32.mrf.mxu0
    %v1740 = vadd.f32 0.0, %v1739
    %v1741 = vpop.f32.mrf.mxu0
    %1742 = vdwg.mxu0
    %1743 = vrot.lane.b32.xlu0 %v1232, 64
    %v1744 = vpop.permute.xlu0 %1743
    %v1747 = vsel %vm487, %v1589, 0
    %1749 = vmatprep.subr.mxu0 0.0
    %1750 = vmatpush1.msra.mxu0 0.0
    %1751 = vmatprep.subr.mxu0 0.0
    %1752 = vmatpush1.msra.mxu0 0.0
    %1753 = vmatprep.subr.mxu0 0.0
    %1754 = vmatpush1.msra.mxu0 0.0
    %1755 = vmatprep.subr.mxu0 0.0
    %1756 = vmatpush1.msra.mxu0 0.0
    %1757 = vmatprep.subr.mxu0 0.0
    %1758 = vmatpush1.msra.mxu0 0.0
    %1759 = vmatprep.subr.mxu0 0.0
    %1760 = vmatpush1.msra.mxu0 0.0
    %1761 = vmatprep.subr.mxu0 0.0
    %1762 = vmatpush1.msra.mxu0 0.0
    %1763 = vmatprep.subr.mxu0 0.0
    %1764 = vmatpush1.msra.mxu0 0.0
    %1765 = vmatprep.subr.mxu0 0.0
    %1766 = vmatpush1.msra.mxu0 0.0
    %1767 = vmatprep.subr.mxu0 0.0
    %1768 = vmatpush1.msra.mxu0 0.0
    %1769 = vmatprep.subr.mxu0 0.0
    %1770 = vmatpush1.msra.mxu0 0.0
    %1771 = vmatprep.subr.mxu0 0.0
    %1772 = vmatpush1.msra.mxu0 0.0
    %1773 = vmatprep.subr.mxu0 0.0
    %1774 = vmatpush1.msra.mxu0 0.0
    %1775 = vmatprep.subr.mxu0 0.0
    %1776 = vmatpush1.msra.mxu0 0.0
    %1777 = vmatprep.subr.mxu0 0.0
    %1778 = vmatpush1.msra.mxu0 0.0
    %1779 = vmatprep.subr.mxu0 0.0
    %1780 = vmatpush1.msra.mxu0 %v1744
    %1781 = vmatprep.subr.mxu0 0.0
    %1782 = vmatpush2.msra.mxu0 0.0
    %1783 = vmatprep.subr.mxu0 0.0
    %1784 = vmatpush2.msra.mxu0 0.0
    %1785 = vmatprep.subr.mxu0 0.0
    %1786 = vmatpush2.msra.mxu0 0.0
    %1787 = vmatprep.subr.mxu0 0.0
    %1788 = vmatpush2.msra.mxu0 0.0
    %1789 = vmatprep.subr.mxu0 0.0
    %1790 = vmatpush2.msra.mxu0 0.0
    %1791 = vmatprep.subr.mxu0 0.0
    %1792 = vmatpush2.msra.mxu0 0.0
    %1793 = vmatprep.subr.mxu0 0.0
    %1794 = vmatpush2.msra.mxu0 0.0
    %1795 = vmatprep.subr.mxu0 0.0
    %1796 = vmatpush2.msra.mxu0 0.0
    %1797 = vmatprep.subr.mxu0 0.0
    %1798 = vmatpush2.msra.mxu0 0.0
    %1799 = vmatprep.subr.mxu0 0.0
    %1800 = vmatpush2.msra.mxu0 0.0
    %1801 = vmatprep.subr.mxu0 0.0
    %1802 = vmatpush2.msra.mxu0 0.0
    %1803 = vmatprep.subr.mxu0 0.0
    %1804 = vmatpush2.msra.mxu0 0.0
    %1805 = vmatprep.subr.mxu0 0.0
    %1806 = vmatpush2.msra.mxu0 0.0
    %1807 = vmatprep.subr.mxu0 0.0
    %1808 = vmatpush2.msra.mxu0 0.0
    %1809 = vmatprep.subr.mxu0 0.0
    %1810 = vmatpush2.msra.mxu0 0.0
    %1811 = vmatprep.subr.mxu0 0.0
    %1812 = vmatpush2.msra.mxu0 0.0
    %1813 = vmatprep.mubr.f32.mxu0 0.0
    %1814 = vmatmul.mubr.f32.gmra.mxu0 %v1747
    %v1815 = vpop.f32.mrf.mxu0
    %v1816 = vadd.f32 0.0, %v1815
    %v1817 = vpop.f32.mrf.mxu0
    %1818 = vdwg.mxu0
    %1819 = vrot.lane.b32.xlu0 %v1234, 64
    %v1820 = vpop.permute.xlu0 %1819
    %v1823 = vsel %vm487, %v1590, 0
    %1825 = vmatprep.subr.mxu0 0.0
    %1826 = vmatpush1.msra.mxu0 0.0
    %1827 = vmatprep.subr.mxu0 0.0
    %1828 = vmatpush1.msra.mxu0 0.0
    %1829 = vmatprep.subr.mxu0 0.0
    %1830 = vmatpush1.msra.mxu0 0.0
    %1831 = vmatprep.subr.mxu0 0.0
    %1832 = vmatpush1.msra.mxu0 0.0
    %1833 = vmatprep.subr.mxu0 0.0
    %1834 = vmatpush1.msra.mxu0 0.0
    %1835 = vmatprep.subr.mxu0 0.0
    %1836 = vmatpush1.msra.mxu0 0.0
    %1837 = vmatprep.subr.mxu0 0.0
    %1838 = vmatpush1.msra.mxu0 0.0
    %1839 = vmatprep.subr.mxu0 0.0
    %1840 = vmatpush1.msra.mxu0 0.0
    %1841 = vmatprep.subr.mxu0 0.0
    %1842 = vmatpush1.msra.mxu0 0.0
    %1843 = vmatprep.subr.mxu0 0.0
    %1844 = vmatpush1.msra.mxu0 0.0
    %1845 = vmatprep.subr.mxu0 0.0
    %1846 = vmatpush1.msra.mxu0 0.0
    %1847 = vmatprep.subr.mxu0 0.0
    %1848 = vmatpush1.msra.mxu0 0.0
    %1849 = vmatprep.subr.mxu0 0.0
    %1850 = vmatpush1.msra.mxu0 0.0
    %1851 = vmatprep.subr.mxu0 0.0
    %1852 = vmatpush1.msra.mxu0 0.0
    %1853 = vmatprep.subr.mxu0 0.0
    %1854 = vmatpush1.msra.mxu0 0.0
    %1855 = vmatprep.subr.mxu0 0.0
    %1856 = vmatpush1.msra.mxu0 %v1820
    %1857 = vmatprep.subr.mxu0 0.0
    %1858 = vmatpush2.msra.mxu0 0.0
    %1859 = vmatprep.subr.mxu0 0.0
    %1860 = vmatpush2.msra.mxu0 0.0
    %1861 = vmatprep.subr.mxu0 0.0
    %1862 = vmatpush2.msra.mxu0 0.0
    %1863 = vmatprep.subr.mxu0 0.0
    %1864 = vmatpush2.msra.mxu0 0.0
    %1865 = vmatprep.subr.mxu0 0.0
    %1866 = vmatpush2.msra.mxu0 0.0
    %1867 = vmatprep.subr.mxu0 0.0
    %1868 = vmatpush2.msra.mxu0 0.0
    %1869 = vmatprep.subr.mxu0 0.0
    %1870 = vmatpush2.msra.mxu0 0.0
    %1871 = vmatprep.subr.mxu0 0.0
    %1872 = vmatpush2.msra.mxu0 0.0
    %1873 = vmatprep.subr.mxu0 0.0
    %1874 = vmatpush2.msra.mxu0 0.0
    %1875 = vmatprep.subr.mxu0 0.0
    %1876 = vmatpush2.msra.mxu0 0.0
    %1877 = vmatprep.subr.mxu0 0.0
    %1878 = vmatpush2.msra.mxu0 0.0
    %1879 = vmatprep.subr.mxu0 0.0
    %1880 = vmatpush2.msra.mxu0 0.0
    %1881 = vmatprep.subr.mxu0 0.0
    %1882 = vmatpush2.msra.mxu0 0.0
    %1883 = vmatprep.subr.mxu0 0.0
    %1884 = vmatpush2.msra.mxu0 0.0
    %1885 = vmatprep.subr.mxu0 0.0
    %1886 = vmatpush2.msra.mxu0 0.0
    %1887 = vmatprep.subr.mxu0 0.0
    %1888 = vmatpush2.msra.mxu0 0.0
    %1889 = vmatprep.mubr.f32.mxu0 0.0
    %1890 = vmatmul.mubr.f32.gmra.mxu0 %v1823
    %v1891 = vpop.f32.mrf.mxu0
    %v1892 = vadd.f32 0.0, %v1891
    %v1893 = vpop.f32.mrf.mxu0
    %1894 = vdwg.mxu0
    %1897 = vrot.lane.b32.xlu0 %v1816, 16
    %v1898 = vpop.permute.xlu0 %1897
    %1899 = vrot.lane.b32.xlu0 %v1892, 16
    %v1900 = vpop.permute.xlu0 %1899
    %v1903 = vsel %vm166, %v1664, %v1898
    %v1904 = vsel %vm166, %v1740, %v1900
    %v1905 = vpack.c.bf16 %v1904, %v1903
    %v1906 = vld [vmem:[%s2 + $0x30] sm:$0xf]
    %v1907 = vld [vmem:[%s2 + $0x34] sm:$0xf]
    %v1908 = vld [vmem:[%s2 + $0x38] sm:$0xf]
    %v1909 = vld [vmem:[%s2 + $0x3c] sm:$0xf]
    %v1910 = vld [vmem:[%s3 + $0xb] sm:$0x1]
    %v1911 = vlaneseq
    %v1912 = vshrl.u32 %v1911, 7
    %v1913 = vsub.s32 0, %v1912
    %v1914 = vrot.slane %v1910, %v1913
    %v1919 = vunpack.c.l.b16 %v1906
    %v1920 = vunpack.c.l.b16 %v1907
    %v1921 = vunpack.c.l.b16 %v1908
    %v1922 = vunpack.c.l.b16 %v1909
    %v1923 = vpack.c.b16 %v1920, %v1919
    %v1924 = vpack.c.b16 %v1922, %v1921
    %v1928 = vsel %vm26, %v1905, 0
    %1930 = vmatprep.subr.bf16.mxu0 0
    %1931 = vmatpush1.bf16.msra.mxu0 0
    %1932 = vmatprep.subr.bf16.mxu0 0
    %1933 = vmatpush1.bf16.msra.mxu0 0
    %1934 = vmatprep.subr.bf16.mxu0 0
    %1935 = vmatpush1.bf16.msra.mxu0 0
    %1936 = vmatprep.subr.bf16.mxu0 0
    %1937 = vmatpush1.bf16.msra.mxu0 0
    %1938 = vmatprep.subr.bf16.mxu0 0
    %1939 = vmatpush1.bf16.msra.mxu0 0
    %1940 = vmatprep.subr.bf16.mxu0 0
    %1941 = vmatpush1.bf16.msra.mxu0 0
    %1942 = vmatprep.subr.bf16.mxu0 0
    %1943 = vmatpush1.bf16.msra.mxu0 %v1924
    %1944 = vmatprep.subr.bf16.mxu0 0
    %1945 = vmatpush1.bf16.msra.mxu0 %v1923
    %1946 = vmatprep.subr.bf16.mxu0 0
    %1947 = vmatpush2.bf16.msra.mxu0 0
    %1948 = vmatprep.subr.bf16.mxu0 0
    %1949 = vmatpush2.bf16.msra.mxu0 0
    %1950 = vmatprep.subr.bf16.mxu0 0
    %1951 = vmatpush2.bf16.msra.mxu0 0
    %1952 = vmatprep.subr.bf16.mxu0 0
    %1953 = vmatpush2.bf16.msra.mxu0 0
    %1954 = vmatprep.subr.bf16.mxu0 0
    %1955 = vmatpush2.bf16.msra.mxu0 0
    %1956 = vmatprep.subr.bf16.mxu0 0
    %1957 = vmatpush2.bf16.msra.mxu0 0
    %1958 = vmatprep.subr.bf16.mxu0 0
    %1959 = vmatpush2.bf16.msra.mxu0 0
    %1960 = vmatprep.subr.bf16.mxu0 0
    %1961 = vmatpush2.bf16.msra.mxu0 0
    %1962 = vmatprep.mubr.bf16.mxu0 0
    %1963 = vmatmul.mubr.bf16.gmra.mxu0 %v1928
    %v1964 = vpop.f32.mrf.mxu0
    %v1965 = vadd.f32 %v1914, %v1964
    %v1966 = vpop.f32.mrf.mxu0
    %v1967 = vpop.f32.mrf.mxu0
    %v1968 = vadd.f32 %v1914, %v1967
    %v1969 = vpop.f32.mrf.mxu0
    %1970 = vdwg.mxu0
    %v1971 = vadd.f32 %v1965, %v1161
    %v1972 = vadd.f32 %v1968, %v1162
    %v1973 = vld [vmem:[%s3 + $0xc] sm:$0x1]
    %v1974 = vld [vmem:[%s3 + $0xd] sm:$0x1]
    %v1975 = vsel %vm26, %v1971, 0.0
    %1976 = vadd.xlane.f32.xlu0 %v1975
    %v1977 = vpop.xlane.xlu0 %1976
    %v1978 = vsel %vm26, %v1972, 0.0
    %1979 = vadd.xlane.f32.xlu0 %v1978
    %v1980 = vpop.xlane.xlu0 %1979
    %v1981 = vmul.f32 %v1977, %v33
    %v1982 = vmul.f32 %v1980, %v33
    %v1983 = vsub.f32 %v1971, %v1981
    %v1984 = vsub.f32 %v1972, %v1982
    %v1985 = vmul.f32 %v1983, %v1983
    %v1986 = vmul.f32 %v1984, %v1984
    %v1987 = vsel %vm26, %v1985, 0.0
    %1988 = vadd.xlane.f32.xlu0 %v1987
    %v1989 = vpop.xlane.xlu0 %1988
    %v1990 = vsel %vm26, %v1986, 0.0
    %1991 = vadd.xlane.f32.xlu0 %v1990
    %v1992 = vpop.xlane.xlu0 %1991
    %v1993 = vmul.f32 %v1989, %v33
    %v1994 = vmul.f32 %v1992, %v33
    %v1995 = vadd.f32 %v1993, 1e-12
    %v1996 = vadd.f32 %v1994, 1e-12
    %v1997 = vrsqrt.pop %v1995
    %v1998 = vrsqrt.pop %v1996
    %v1999 = vmul.f32 %v1983, %v1997
    %v2000 = vmul.f32 %v1984, %v1998
    %v2001 = vlaneseq
    %v2002 = vshrl.u32 %v2001, 7
    %v2003 = vsub.s32 0, %v2002
    %v2004 = vrot.slane %v1973, %v2003
    %v2005 = vmul.f32 %v1999, %v2004
    %v2006 = vmul.f32 %v2000, %v2004
    %v2007 = vlaneseq
    %v2008 = vshrl.u32 %v2007, 7
    %v2009 = vsub.s32 0, %v2008
    %v2010 = vrot.slane %v1974, %v2009
    %v2011 = vadd.f32 %v2005, %v2010
    %v2012 = vadd.f32 %v2006, %v2010
    %v2013 = vpack.c.bf16 %v2012, %v2011
    %v2014 = vld [vmem:[%s2 + $0x50] sm:$0xf]
    %v2015 = vld [vmem:[%s2 + $0x54] sm:$0xf]
    %v2016 = vld [vmem:[%s2 + $0x58] sm:$0xf]
    %v2017 = vld [vmem:[%s2 + $0x5c] sm:$0xf]
    %v2018 = vld [vmem:[%s3 + $0xe] sm:$0x1]
    %v2019 = vlaneseq
    %v2020 = vshrl.u32 %v2019, 7
    %v2021 = vsub.s32 0, %v2020
    %v2022 = vrot.slane %v2018, %v2021
    %v2027 = vunpack.c.l.b16 %v2014
    %v2028 = vunpack.c.l.b16 %v2015
    %v2029 = vunpack.c.l.b16 %v2016
    %v2030 = vunpack.c.l.b16 %v2017
    %v2031 = vpack.c.b16 %v2028, %v2027
    %v2032 = vpack.c.b16 %v2030, %v2029
    %v2036 = vsel %vm26, %v2013, 0
    %2038 = vmatprep.subr.bf16.mxu0 0
    %2039 = vmatpush1.bf16.msra.mxu0 0
    %2040 = vmatprep.subr.bf16.mxu0 0
    %2041 = vmatpush1.bf16.msra.mxu0 0
    %2042 = vmatprep.subr.bf16.mxu0 0
    %2043 = vmatpush1.bf16.msra.mxu0 0
    %2044 = vmatprep.subr.bf16.mxu0 0
    %2045 = vmatpush1.bf16.msra.mxu0 0
    %2046 = vmatprep.subr.bf16.mxu0 0
    %2047 = vmatpush1.bf16.msra.mxu0 0
    %2048 = vmatprep.subr.bf16.mxu0 0
    %2049 = vmatpush1.bf16.msra.mxu0 0
    %2050 = vmatprep.subr.bf16.mxu0 0
    %2051 = vmatpush1.bf16.msra.mxu0 %v2032
    %2052 = vmatprep.subr.bf16.mxu0 0
    %2053 = vmatpush1.bf16.msra.mxu0 %v2031
    %2054 = vmatprep.subr.bf16.mxu0 0
    %2055 = vmatpush2.bf16.msra.mxu0 0
    %2056 = vmatprep.subr.bf16.mxu0 0
    %2057 = vmatpush2.bf16.msra.mxu0 0
    %2058 = vmatprep.subr.bf16.mxu0 0
    %2059 = vmatpush2.bf16.msra.mxu0 0
    %2060 = vmatprep.subr.bf16.mxu0 0
    %2061 = vmatpush2.bf16.msra.mxu0 0
    %2062 = vmatprep.subr.bf16.mxu0 0
    %2063 = vmatpush2.bf16.msra.mxu0 0
    %2064 = vmatprep.subr.bf16.mxu0 0
    %2065 = vmatpush2.bf16.msra.mxu0 0
    %2066 = vmatprep.subr.bf16.mxu0 0
    %2067 = vmatpush2.bf16.msra.mxu0 0
    %2068 = vmatprep.subr.bf16.mxu0 0
    %2069 = vmatpush2.bf16.msra.mxu0 0
    %2070 = vmatprep.mubr.bf16.mxu0 0
    %2071 = vmatmul.mubr.bf16.gmra.mxu0 %v2036
    %v2072 = vpop.f32.mrf.mxu0
    %v2073 = vadd.f32 %v2022, %v2072
    %v2074 = vpop.f32.mrf.mxu0
    %v2075 = vpop.f32.mrf.mxu0
    %v2076 = vadd.f32 %v2022, %v2075
    %v2077 = vpop.f32.mrf.mxu0
    %2078 = vdwg.mxu0
    %v2079 = vmul.f32 %v2073, 0.5
    %v2080 = vmul.f32 %v2076, 0.5
    %v2081 = vmul.f32 %v2073, 0.044715
    %v2082 = vmul.f32 %v2076, 0.044715
    %v2083 = vmul.f32 %v2081, %v2073
    %v2084 = vmul.f32 %v2082, %v2076
    %v2085 = vmul.f32 %v2083, %v2073
    %v2086 = vmul.f32 %v2084, %v2076
    %v2087 = vadd.f32 %v2073, %v2085
    %v2088 = vadd.f32 %v2076, %v2086
    %v2089 = vmul.f32 %v2087, 0.7978846
    %v2090 = vmul.f32 %v2088, 0.7978846
    %v2091 = vtanh.pop %v2089
    %v2092 = vtanh.pop %v2090
    %v2093 = vadd.f32 %v2091, 1.0
    %v2094 = vadd.f32 %v2092, 1.0
    %v2095 = vmul.f32 %v2079, %v2093
    %v2096 = vmul.f32 %v2080, %v2094
    %v2097 = vpack.c.bf16 %v2096, %v2095
    %v2098 = vld [vmem:[%s2 + $0x80] sm:$0xf]
    %v2099 = vld [vmem:[%s2 + $0x84] sm:$0xf]
    %v2100 = vld [vmem:[%s2 + $0x88] sm:$0xf]
    %v2101 = vld [vmem:[%s2 + $0x8c] sm:$0xf]
    %v2102 = vld [vmem:[%s2 + $0x90] sm:$0xf]
    %v2103 = vld [vmem:[%s2 + $0x94] sm:$0xf]
    %v2104 = vld [vmem:[%s2 + $0x98] sm:$0xf]
    %v2105 = vld [vmem:[%s2 + $0x9c] sm:$0xf]
    %v2106 = vld [vmem:[%s3 + $0xf] sm:$0x1]
    %v2107 = vlaneseq
    %v2108 = vshrl.u32 %v2107, 7
    %v2109 = vsub.s32 0, %v2108
    %v2110 = vrot.slane %v2106, %v2109
    %v2119 = vunpack.c.l.b16 %v2098
    %v2120 = vunpack.c.l.b16 %v2099
    %v2121 = vunpack.c.l.b16 %v2100
    %v2122 = vunpack.c.l.b16 %v2101
    %v2123 = vunpack.c.l.b16 %v2102
    %v2124 = vunpack.c.l.b16 %v2103
    %v2125 = vunpack.c.l.b16 %v2104
    %v2126 = vunpack.c.l.b16 %v2105
    %v2127 = vpack.c.b16 %v2120, %v2119
    %v2128 = vpack.c.b16 %v2122, %v2121
    %v2129 = vpack.c.b16 %v2124, %v2123
    %v2130 = vpack.c.b16 %v2126, %v2125
    %v2136 = vsel %vm1076, %v2097, 0
    %2138 = vmatprep.subr.bf16.mxu0 0
    %2139 = vmatpush1.bf16.msra.mxu0 0
    %2140 = vmatprep.subr.bf16.mxu0 0
    %2141 = vmatpush1.bf16.msra.mxu0 0
    %2142 = vmatprep.subr.bf16.mxu0 0
    %2143 = vmatpush1.bf16.msra.mxu0 0
    %2144 = vmatprep.subr.bf16.mxu0 0
    %2145 = vmatpush1.bf16.msra.mxu0 0
    %2146 = vmatprep.subr.bf16.mxu0 0
    %2147 = vmatpush1.bf16.msra.mxu0 %v2130
    %2148 = vmatprep.subr.bf16.mxu0 0
    %2149 = vmatpush1.bf16.msra.mxu0 %v2129
    %2150 = vmatprep.subr.bf16.mxu0 0
    %2151 = vmatpush1.bf16.msra.mxu0 %v2128
    %2152 = vmatprep.subr.bf16.mxu0 0
    %2153 = vmatpush1.bf16.msra.mxu0 %v2127
    %2154 = vmatprep.subr.bf16.mxu0 0
    %2155 = vmatpush2.bf16.msra.mxu0 0
    %2156 = vmatprep.subr.bf16.mxu0 0
    %2157 = vmatpush2.bf16.msra.mxu0 0
    %2158 = vmatprep.subr.bf16.mxu0 0
    %2159 = vmatpush2.bf16.msra.mxu0 0
    %2160 = vmatprep.subr.bf16.mxu0 0
    %2161 = vmatpush2.bf16.msra.mxu0 0
    %2162 = vmatprep.subr.bf16.mxu0 0
    %2163 = vmatpush2.bf16.msra.mxu0 0
    %2164 = vmatprep.subr.bf16.mxu0 0
    %2165 = vmatpush2.bf16.msra.mxu0 0
    %2166 = vmatprep.subr.bf16.mxu0 0
    %2167 = vmatpush2.bf16.msra.mxu0 0
    %2168 = vmatprep.subr.bf16.mxu0 0
    %2169 = vmatpush2.bf16.msra.mxu0 0
    %2170 = vmatprep.mubr.bf16.mxu0 0
    %2171 = vmatmul.mubr.bf16.gmra.mxu0 %v2136
    %v2172 = vpop.f32.mrf.mxu0
    %v2173 = vadd.f32 %v2110, %v2172
    %v2174 = vpop.f32.mrf.mxu0
    %v2175 = vpop.f32.mrf.mxu0
    %v2176 = vadd.f32 %v2110, %v2175
    %v2177 = vpop.f32.mrf.mxu0
    %2178 = vdwg.mxu0
    %v2179 = vadd.f32 %v2173, %v2011
    %v2180 = vadd.f32 %v2176, %v2012
    %v2181 = vld [vmem:[%s3 + $0x10] sm:$0x1]
    %v2182 = vld [vmem:[%s3 + $0x11] sm:$0x1]
    %v2183 = vsel %vm26, %v2179, 0.0
    %2184 = vadd.xlane.f32.xlu0 %v2183
    %v2185 = vpop.xlane.xlu0 %2184
    %v2186 = vsel %vm26, %v2180, 0.0
    %2187 = vadd.xlane.f32.xlu0 %v2186
    %v2188 = vpop.xlane.xlu0 %2187
    %v2189 = vmul.f32 %v2185, %v33
    %v2190 = vmul.f32 %v2188, %v33
    %v2191 = vsub.f32 %v2179, %v2189
    %v2192 = vsub.f32 %v2180, %v2190
    %v2193 = vmul.f32 %v2191, %v2191
    %v2194 = vmul.f32 %v2192, %v2192
    %v2195 = vsel %vm26, %v2193, 0.0
    %2196 = vadd.xlane.f32.xlu0 %v2195
    %v2197 = vpop.xlane.xlu0 %2196
    %v2198 = vsel %vm26, %v2194, 0.0
    %2199 = vadd.xlane.f32.xlu0 %v2198
    %v2200 = vpop.xlane.xlu0 %2199
    %v2201 = vmul.f32 %v2197, %v33
    %v2202 = vmul.f32 %v2200, %v33
    %v2203 = vadd.f32 %v2201, 1e-12
    %v2204 = vadd.f32 %v2202, 1e-12
    %v2205 = vrsqrt.pop %v2203
    %v2206 = vrsqrt.pop %v2204
    %v2207 = vmul.f32 %v2191, %v2205
    %v2208 = vmul.f32 %v2192, %v2206
    %v2209 = vlaneseq
    %v2210 = vshrl.u32 %v2209, 7
    %v2211 = vsub.s32 0, %v2210
    %v2212 = vrot.slane %v2181, %v2211
    %v2213 = vmul.f32 %v2207, %v2212
    %v2214 = vmul.f32 %v2208, %v2212
    %v2215 = vlaneseq
    %v2216 = vshrl.u32 %v2215, 7
    %v2217 = vsub.s32 0, %v2216
    %v2218 = vrot.slane %v2182, %v2217
    %v2219 = vadd.f32 %v2213, %v2218
    %v2220 = vadd.f32 %v2214, %v2218
    %v2221 = vpack.c.bf16 %v2219, %v2219
    %v2222 = vpack.c.bf16 %v2220, %v2220
    %v2223 = vld [vmem:[%s2 + $0xa0] sm:$0xf]
    %v2224 = vld [vmem:[%s2 + $0xa4] sm:$0xf]
    %v2225 = vld [vmem:[%s2 + $0xa8] sm:$0xf]
    %v2226 = vld [vmem:[%s2 + $0xac] sm:$0xf]
    %v2227 = vld [vmem:[%s3 + $0x12] sm:$0x1]
    %v2228 = vlaneseq
    %v2229 = vshrl.u32 %v2228, 7
    %v2230 = vsub.s32 0, %v2229
    %v2231 = vrot.slane %v2227, %v2230
    %v2234 = vunpack.c.l.b16 %v2221
    %v2235 = vunpack.c.l.b16 %v2222
    %v2236 = vrot.slane %v2235, 7
    %vm2237 = vcmask 1041409
    %v2238 = vsel %vm2237, %v2236, %v2234
    %v2239 = vpack.c.b16 %v2238, %v2238
    %v2244 = vunpack.c.l.b16 %v2223
    %v2245 = vunpack.c.l.b16 %v2224
    %v2246 = vunpack.c.l.b16 %v2225
    %v2247 = vunpack.c.l.b16 %v2226
    %v2248 = vpack.c.b16 %v2245, %v2244
    %v2249 = vpack.c.b16 %v2247, %v2246
    %v2253 = vsel %vm26, %v2239, 0
    %2255 = vmatprep.subr.bf16.mxu0 0
    %2256 = vmatpush1.bf16.msra.mxu0 0
    %2257 = vmatprep.subr.bf16.mxu0 0
    %2258 = vmatpush1.bf16.msra.mxu0 0
    %2259 = vmatprep.subr.bf16.mxu0 0
    %2260 = vmatpush1.bf16.msra.mxu0 0
    %2261 = vmatprep.subr.bf16.mxu0 0
    %2262 = vmatpush1.bf16.msra.mxu0 0
    %2263 = vmatprep.subr.bf16.mxu0 0
    %2264 = vmatpush1.bf16.msra.mxu0 0
    %2265 = vmatprep.subr.bf16.mxu0 0
    %2266 = vmatpush1.bf16.msra.mxu0 0
    %2267 = vmatprep.subr.bf16.mxu0 0
    %2268 = vmatpush1.bf16.msra.mxu0 %v2249
    %2269 = vmatprep.subr.bf16.mxu0 0
    %2270 = vmatpush1.bf16.msra.mxu0 %v2248
    %2271 = vmatprep.subr.bf16.mxu0 0
    %2272 = vmatpush2.bf16.msra.mxu0 0
    %2273 = vmatprep.subr.bf16.mxu0 0
    %2274 = vmatpush2.bf16.msra.mxu0 0
    %2275 = vmatprep.subr.bf16.mxu0 0
    %2276 = vmatpush2.bf16.msra.mxu0 0
    %2277 = vmatprep.subr.bf16.mxu0 0
    %2278 = vmatpush2.bf16.msra.mxu0 0
    %2279 = vmatprep.subr.bf16.mxu0 0
    %2280 = vmatpush2.bf16.msra.mxu0 0
    %2281 = vmatprep.subr.bf16.mxu0 0
    %2282 = vmatpush2.bf16.msra.mxu0 0
    %2283 = vmatprep.subr.bf16.mxu0 0
    %2284 = vmatpush2.bf16.msra.mxu0 0
    %2285 = vmatprep.subr.bf16.mxu0 0
    %2286 = vmatpush2.bf16.msra.mxu0 0
    %2287 = vmatprep.mubr.bf16.mxu0 0
    %2288 = vmatmul.mubr.bf16.gmra.mxu0 %v2253
    %v2289 = vpop.f32.mrf.mxu0
    %v2290 = vadd.f32 %v2231, %v2289
    %v2291 = vpop.f32.mrf.mxu0
    %v2292 = vpop.f32.mrf.mxu0
    %v2293 = vpop.f32.mrf.mxu0
    %2294 = vdwg.mxu0
    %v2295 = vtanh.pop %v2290
    %2296 = vst [vmem:[#allocation4] sm:$0x3] %v2295
    %v2297 = vpack.c.bf16 %v2295, %v2295
    %v2298 = vld [vmem:[%s2 + $0xb0] sm:$0xf]
    %v2299 = vld [vmem:[%s2 + $0xb4] sm:$0xf]
    %v2300 = vld [vmem:[%s2 + $0xb8] sm:$0xf]
    %v2301 = vld [vmem:[%s2 + $0xbc] sm:$0xf]
    %v2302 = vld [vmem:[%s3 + $0x13] sm:$0x1]
    %v2303 = vlaneseq
    %v2304 = vshrl.u32 %v2303, 7
    %v2305 = vsub.s32 0, %v2304
    %v2306 = vrot.slane %v2302, %v2305
    %v2311 = vunpack.c.l.b16 %v2298
    %v2312 = vunpack.c.l.b16 %v2299
    %v2313 = vunpack.c.l.b16 %v2300
    %v2314 = vunpack.c.l.b16 %v2301
    %v2315 = vpack.c.b16 %v2312, %v2311
    %v2316 = vpack.c.b16 %v2314, %v2313
    %v2320 = vsel %vm26, %v2297, 0
    %2322 = vmatprep.subr.bf16.mxu0 0
    %2323 = vmatpush1.bf16.msra.mxu0 0
    %2324 = vmatprep.subr.bf16.mxu0 0
    %2325 = vmatpush1.bf16.msra.mxu0 0
    %2326 = vmatprep.subr.bf16.mxu0 0
    %2327 = vmatpush1.bf16.msra.mxu0 0
    %2328 = vmatprep.subr.bf16.mxu0 0
    %2329 = vmatpush1.bf16.msra.mxu0 0
    %2330 = vmatprep.subr.bf16.mxu0 0
    %2331 = vmatpush1.bf16.msra.mxu0 0
    %2332 = vmatprep.subr.bf16.mxu0 0
    %2333 = vmatpush1.bf16.msra.mxu0 0
    %2334 = vmatprep.subr.bf16.mxu0 0
    %2335 = vmatpush1.bf16.msra.mxu0 %v2316
    %2336 = vmatprep.subr.bf16.mxu0 0
    %2337 = vmatpush1.bf16.msra.mxu0 %v2315
    %2338 = vmatprep.subr.bf16.mxu0 0
    %2339 = vmatpush2.bf16.msra.mxu0 0
    %2340 = vmatprep.subr.bf16.mxu0 0
    %2341 = vmatpush2.bf16.msra.mxu0 0
    %2342 = vmatprep.subr.bf16.mxu0 0
    %2343 = vmatpush2.bf16.msra.mxu0 0
    %2344 = vmatprep.subr.bf16.mxu0 0
    %2345 = vmatpush2.bf16.msra.mxu0 0
    %2346 = vmatprep.subr.bf16.mxu0 0
    %2347 = vmatpush2.bf16.msra.mxu0 0
    %2348 = vmatprep.subr.bf16.mxu0 0
    %2349 = vmatpush2.bf16.msra.mxu0 0
    %2350 = vmatprep.subr.bf16.mxu0 0
    %2351 = vmatpush2.bf16.msra.mxu0 0
    %2352 = vmatprep.subr.bf16.mxu0 0
    %2353 = vmatpush2.bf16.msra.mxu0 0
    %2354 = vmatprep.mubr.bf16.mxu0 0
    %2355 = vmatmul.mubr.bf16.gmra.mxu0 %v2320
    %v2356 = vpop.f32.mrf.mxu0
    %v2357 = vadd.f32 %v2306, %v2356
    %v2358 = vpop.f32.mrf.mxu0
    %v2359 = vpop.f32.mrf.mxu0
    %v2360 = vpop.f32.mrf.mxu0
    %2361 = vdwg.mxu0
    %2362 = vst [vmem:[#allocation2] sm:$0x3] %v2357
    // Predicated region
    $region18: #{forward.1} parent=1 // pred_check
      _
    $region19: #{forward.1} parent=1 // pred_check_branch
      %2364 = sbr.rel (0) target = $region21
    $region20: #{forward.1} parent=1 // pred_region
      %s2366 = ssub.s32 32, 32
      %2367 = vsyncadd [#allocation3], %s2366
      %s2369 = sshll.u32 [#allocation2], 4
      %s2370 = int_to_ptr.vmem [resolvable:$true] %s2369
      %2372 = dma.vmem_to_hbm [thread:$0]  %s2370, 32, %s4, [#allocation3]
    $region21: #{forward.1} parent=1 // pred_fallthru
      _
    // Predicated region
    $region22: #{forward.1} parent=1 // pred_check
      _
    $region23: #{forward.1} parent=1 // pred_check_branch
      %2374 = sbr.rel (0) target = $region25
    $region24: #{forward.1} parent=1 // pred_region
      %s2376 = ssub.s32 32, 32
      %2377 = vsyncadd [#allocation5], %s2376
      %s2379 = sshll.u32 [#allocation4], 4
      %s2380 = int_to_ptr.vmem [resolvable:$true] %s2379
      %2382 = dma.vmem_to_hbm [thread:$0]  %s2380, 32, %s5, [#allocation5]
    $region25: #{forward.1} parent=1 // pred_fallthru
      _
    // Predicated region
    $region26: #{forward.1} parent=1 // pred_check
      _
    $region27: #{forward.1} parent=1 // pred_check_branch
      %2384 = sbr.rel (0) target = $region29
    $region28: #{forward.1} parent=1 // pred_region
      %2385 = dma.done [#allocation3], 32
    $region29: #{forward.1} parent=1 // pred_fallthru
      _
    // Predicated region
    $region30: #{forward.1} parent=1 // pred_check
      _
    $region31: #{forward.1} parent=1 // pred_check_branch
      %2387 = sbr.rel (0) target = $region33
    $region32: #{forward.1} parent=1 // pred_region
      %2388 = dma.done [#allocation5], 32
    $region33: #{forward.1} parent=1 // pred_fallthru
      _
    %2389 = vsyncpa [#allocation3], 1
    %2390 = vsyncpa [#allocation5], 1

</llo_original>
